<compile_context>
chip_gen: v5e
topology: v5e:2x2
jax: 0.10.0
libtpu: 0.0.40
codegen_flags: <defaults>
</compile_context>

<pallas_src>
import functools

import jax
import jax.numpy as jnp
import numpy as np
from jax import lax
from jax.experimental import pallas as pl
from jax.experimental.pallas import tpu as pltpu


# --------------------------------------------------------------------------
# Fused Pallas kernel: attentive layer + sequence pooling + projection head
# --------------------------------------------------------------------------
def clve_fused_kernel(x_ref,
                      ln1_g, ln1_b, wqkv_t, bqkv, wo_t, bo,
                      ln2_g, ln2_b, w1_hbm, b1, w2_hbm, b2,
                      wlin_col, blin, wp_t, bp, wfc_t, bfc, lng, lnb,
                      o_ref,
                      attn_sc, w1_vmem, w2_vmem, dma_sem,
                      *, n_head, compute_dtype, approx_recip):
    # ---- kick off the (largest) MLP-weight DMAs first: they are only needed
    #      after the attention phase, so the fetch hides under LN1/QKV/attn
    #      compute instead of extending the pipeline prologue.
    w1_cp = pltpu.make_async_copy(w1_hbm, w1_vmem, dma_sem.at[0])
    w2_cp = pltpu.make_async_copy(w2_hbm, w2_vmem, dma_sem.at[1])
    w1_cp.start()
    w2_cp.start()

    x = x_ref[0]                                   # (S, D), f32
    S, D = x.shape
    Dh = D // n_head
    scale = jnp.float32(1.0 / np.sqrt(Dh))
    cdt = compute_dtype

    def ln(v, g_ref, b_ref):
        mu = jnp.mean(v, axis=-1, keepdims=True)
        var = jnp.mean((v - mu) ** 2, axis=-1, keepdims=True)
        return (v - mu) * lax.rsqrt(var + 1e-5) * g_ref[...] + b_ref[...]

    # ---- LayerNorm 1 (f32 VPU math) ----
    xn = ln(x, ln1_g, ln1_b)

    # ---- fused QKV projection: one (S,D)@(D,3D) MXU pass, weights pre-T'd ----
    qkv = jnp.dot(xn.astype(cdt), wqkv_t[...],
                  preferred_element_type=jnp.float32) + bqkv[...]
    q = qkv[:, 0 * D:1 * D]
    k = qkv[:, 1 * D:2 * D]
    v = qkv[:, 2 * D:3 * D]

    # ---- per-head attention; each head's output lands in the VMEM scratch ----
    # TODO(synk): when D/n_head is not a 128 multiple (e.g. D=864, n_head=12),
    #             padding each head's q/k/v segment to a 128-lane stride would
    #             remove per-head XLU relayouts / masked stores at the cost of
    #             wider QKV/WO matmuls + weight DMA; not applied here.
    for hh in range(n_head):                       # static unroll, small n_head
        sl = slice(hh * Dh, (hh + 1) * Dh)
        qh = q[:, sl].astype(cdt)
        kh = k[:, sl].astype(cdt)
        vh = v[:, sl].astype(cdt)
        # q @ k^T via dot_general (no materialized transpose)
        s = lax.dot_general(qh, kh, (((1,), (1,)), ((), ())),
                            preferred_element_type=jnp.float32) * scale
        s = s - jnp.max(s, axis=-1, keepdims=True)
        p = jnp.exp(s)
        p = p * pl.reciprocal(jnp.sum(p, axis=-1, keepdims=True),
                              approx=approx_recip)
        attn_sc[:, sl] = jnp.dot(p.astype(cdt), vh,
                                 preferred_element_type=jnp.float32
                                 ).astype(attn_sc.dtype)

    # ---- single full-K output projection + residual 1 (attn_sc already cdt) --
    attn_out = jnp.dot(attn_sc[...], wo_t[...],
                       preferred_element_type=jnp.float32) + bo[...]
    x = attn_out + x

    # ---- LayerNorm 2 + MLP (QuickGELU) + residual 2 ----
    xn = ln(x, ln2_g, ln2_b)
    w1_cp.wait()                                   # overlapped with attention above
    h1 = jnp.dot(xn.astype(cdt), w1_vmem[...],
                 preferred_element_type=jnp.float32) + b1[...]
    h1 = h1 * jax.nn.sigmoid(1.702 * h1)
    w2_cp.wait()
    h2 = jnp.dot(h1.astype(cdt), w2_vmem[...],
                 preferred_element_type=jnp.float32) + b2[...]
    state = h2 + x                                 # (S, D) f32, stays in VMEM

    # ---- sequence pool Linear(S->1) as a VPU reduction (not an M=1 matmul) --
    pooled = jnp.sum(state * wlin_col[...], axis=0, keepdims=True) + blin[...]  # (1,D)

    # ---- CLVEProjectionHead (M=1 path, f32) ----
    proj = jnp.dot(pooled, wp_t[...], preferred_element_type=jnp.float32) + bp[...]
    g = proj * jax.nn.sigmoid(1.702 * proj)
    fc = jnp.dot(g, wfc_t[...], preferred_element_type=jnp.float32) + bfc[...]
    # TODO(synk): nn.Dropout omitted (identity at inference / deterministic run)
    y = fc + proj
    o_ref[0] = ln(y, lng, lnb)                     # (1, C)


# --------------------------------------------------------------------------
# Wrapper
# --------------------------------------------------------------------------
_RESIDENT = "resident"     # auto-fetched once, single-buffered, lives in VMEM
_MANUAL_DMA = "manual"     # left in HBM; kernel DMAs it, overlapped w/ compute


def _const_index_map(ndim):
    return lambda b: (0,) * ndim


def _resident_spec(arr):
    # Whole array resident in VMEM; index_map constant across the batch grid,
    # so it is fetched exactly once.  Buffered(1) disables the default double
    # buffering (useless for constant blocks) and halves the weight footprint.
    return pl.BlockSpec(arr.shape, _const_index_map(arr.ndim),
                        pipeline_mode=pl.Buffered(1))


def _prepare_operands(lp, pp, S, compute_dtype):
    """Pre-transpose / pre-cast weights once in XLA (outside the kernel)."""
    cdt = compute_dtype
    return [
        (lp["ln1_g"], _RESIDENT), (lp["ln1_b"], _RESIDENT),
        (lp["wqkv"].T.astype(cdt), _RESIDENT),      # (D, 3D)
        (lp["bqkv"], _RESIDENT),
        (lp["wo"].T.astype(cdt), _RESIDENT),        # (D, D)
        (lp["bo"], _RESIDENT),
        (lp["ln2_g"], _RESIDENT), (lp["ln2_b"], _RESIDENT),
        (lp["w1"].T.astype(cdt), _MANUAL_DMA),      # (D, 4D)  largest weights:
        (lp["b1"], _RESIDENT),
        (lp["w2"].T.astype(cdt), _MANUAL_DMA),      # (4D, D)  kernel-side DMA
        (lp["b2"], _RESIDENT),
        (pp["wlin"].reshape(S, 1), _RESIDENT),      # (S,1) column for VPU pool
        (pp["blin"], _RESIDENT),
        (pp["wp"].T, _RESIDENT),                    # (D, C)  tiny M=1 path, f32
        (pp["bp"], _RESIDENT),
        (pp["wfc"].T, _RESIDENT),                   # (C, C)
        (pp["bfc"], _RESIDENT),
        (pp["lng"], _RESIDENT), (pp["lnb"], _RESIDENT),
    ]


def _vmem_limit_bytes(ops, S, D, C, compute_dtype):
    """Footprint-based scoped-VMEM request; never the full 64 MiB of v7x."""
    def nbytes(a):
        return int(np.prod(a.shape)) * jnp.dtype(a.dtype).itemsize
    cbytes = jnp.dtype(compute_dtype).itemsize
    resident = sum(nbytes(a) for a, m in ops if m == _RESIDENT)   # 1 buffer each
    manual = sum(nbytes(a) for a, m in ops if m == _MANUAL_DMA)   # VMEM scratch copies
    io = 2 * S * D * 4 + 2 * C * 4                                # pipelined x / out
    scratch = S * D * cbytes                                      # attn_sc
    temps = S * (3 * D + 4 * D + 4 * D) * 4 + S * S * 4           # qkv, h1, residuals, scores
    est = resident + manual + io + scratch + temps
    return int(min(48 * 2**20, max(32 * 2**20, 2 * est + 8 * 2**20)))


def clve_forward(rgbd_feat, layer_params, pool_params, n_head,
                 compute_dtype=jnp.bfloat16):
    """rgbd_feat: (B, D, h, w) NCHW feature map from the frozen backbone."""
    B, D, h, w = rgbd_feat.shape
    S = h * w
    assert D % n_head == 0, "d_embed must be divisible by num_heads"
    x = rgbd_feat.reshape(B, D, S).transpose(0, 2, 1)             # (B, S, D)

    # PyTorch loop bug reproduced: every layer consumes the ORIGINAL rgbd_feat
    # and only the last layer's output survives -> run only the last layer.
    lp = layer_params[-1]
    ops = _prepare_operands(lp, pool_params, S, compute_dtype)
    arrays = [a for a, _ in ops]
    C = pool_params["wp"].shape[0]
    DFF = lp["w1"].shape[0]

    in_specs = [pl.BlockSpec((1, S, D), lambda b: (b, 0, 0))]
    for a, mode in ops:
        if mode == _MANUAL_DMA:
            in_specs.append(pl.BlockSpec(memory_space=pl.ANY))    # stays in HBM
        else:
            in_specs.append(_resident_spec(a))

    kernel = functools.partial(
        clve_fused_kernel, n_head=n_head, compute_dtype=compute_dtype,
        approx_recip=(jnp.dtype(compute_dtype) != jnp.dtype(jnp.float32)))

    out = pl.pallas_call(
        kernel,
        out_shape=jax.ShapeDtypeStruct((B, 1, C), jnp.float32),
        grid=(B,),
        in_specs=in_specs,
        out_specs=pl.BlockSpec((1, 1, C), lambda b: (b, 0, 0)),
        scratch_shapes=[
            pltpu.VMEM((S, D), compute_dtype),       # per-head attention outputs
            pltpu.VMEM((D, DFF), compute_dtype),     # w1 (manual DMA destination)
            pltpu.VMEM((DFF, D), compute_dtype),     # w2 (manual DMA destination)
            pltpu.SemaphoreType.DMA((2,)),
        ],
        compiler_params=pltpu.CompilerParams(
            # Batch axis is parallel -> B>=2 keeps both v7x TensorCores busy.
            dimension_semantics=("parallel",),
            vmem_limit_bytes=_vmem_limit_bytes(ops, S, D, C, compute_dtype),
        ),
    )(x, *arrays)
    return out[:, 0, :]                                           # (B, C)


# --------------------------------------------------------------------------
# Pure-JAX reference (for correctness check)
# --------------------------------------------------------------------------
def _qgelu(x):
    return x * jax.nn.sigmoid(1.702 * x)


def _ln(x, g, b, eps=1e-5):
    mu = x.mean(-1, keepdims=True)
    var = ((x - mu) ** 2).mean(-1, keepdims=True)
    return (x - mu) / jnp.sqrt(var + eps) * g + b


def ref_attentive(x, p, n_head):
    B, S, D = x.shape
    Dh = D // n_head
    res = x
    xn = _ln(x, p["ln1_g"][0], p["ln1_b"][0])
    w, b = p["wqkv"], p["bqkv"][0]
    q = xn @ w[:D].T + b[:D]
    k = xn @ w[D:2 * D].T + b[D:2 * D]
    v = xn @ w[2 * D:].T + b[2 * D:]
    q = q.reshape(B, S, n_head, Dh).transpose(0, 2, 1, 3)
    k = k.reshape(B, S, n_head, Dh).transpose(0, 2, 1, 3)
    v = v.reshape(B, S, n_head, Dh).transpose(0, 2, 1, 3)
    s = jnp.einsum("bhqd,bhkd->bhqk", q, k) / jnp.sqrt(jnp.float32(Dh))
    a = jax.nn.softmax(s, -1)
    o = jnp.einsum("bhqk,bhkd->bhqd", a, v).transpose(0, 2, 1, 3).reshape(B, S, D)
    x = o @ p["wo"].T + p["bo"][0] + res
    res = x
    xn = _ln(x, p["ln2_g"][0], p["ln2_b"][0])
    hh = _qgelu(xn @ p["w1"].T + p["b1"][0])
    return hh @ p["w2"].T + p["b2"][0] + res


def ref_forward(rgbd_feat, layer_params, pool_params, n_head):
    B, D, h, w = rgbd_feat.shape
    x = rgbd_feat.reshape(B, D, h * w).transpose(0, 2, 1)
    state = x
    for lp in layer_params:                        # same "bug" as PyTorch loop
        state = ref_attentive(x, lp, n_head)
    pooled = jnp.einsum("bsd,s->bd", state, pool_params["wlin"][0]) + pool_params["blin"][0, 0]
    proj = pooled @ pool_params["wp"].T + pool_params["bp"][0]
    g = _qgelu(proj)
    fc = g @ pool_params["wfc"].T + pool_params["bfc"][0]
    y = fc + proj
    return _ln(y, pool_params["lng"][0], pool_params["lnb"][0])


# --------------------------------------------------------------------------
# Main
# --------------------------------------------------------------------------
if __name__ == "__main__":
    # Small synthetic config (stand-in for d_embed=384..864, image_size=300):
    B, D, h, w = 2, 32, 2, 4        # rgbd_feat: (batch, d_embed, h, w), S = h*w = 8
    S = h * w
    N_HEAD = 4
    N_LAYERS = 2
    OUT_C = 16                      # out_channels
    DFF = 4 * D

    key = jax.random.PRNGKey(0)
    keys = iter(jax.random.split(key, 64))

    def nrm(shape, scale=0.05):
        return (scale * jax.random.normal(next(keys), shape)).astype(jnp.float32)

    layer_params = []
    for _ in range(N_LAYERS):
        layer_params.append(dict(
            ln1_g=jnp.ones((1, D), jnp.float32) + nrm((1, D), 0.01),
            ln1_b=nrm((1, D), 0.01),
            wqkv=nrm((3 * D, D)),
            bqkv=nrm((1, 3 * D), 0.01),
            wo=nrm((D, D)),
            bo=nrm((1, D), 0.01),
            ln2_g=jnp.ones((1, D), jnp.float32) + nrm((1, D), 0.01),
            ln2_b=nrm((1, D), 0.01),
            w1=nrm((DFF, D)),
            b1=nrm((1, DFF), 0.01),
            w2=nrm((D, DFF)),
            b2=nrm((1, D), 0.01),
        ))

    pool_params = dict(
        wlin=nrm((1, S)),           # nn.Linear(image_size=S, 1) weight
        blin=nrm((1, 1), 0.01),
        wp=nrm((OUT_C, D)),         # projection: Linear(D, OUT_C)
        bp=nrm((1, OUT_C), 0.01),
        wfc=nrm((OUT_C, OUT_C)),    # fc: Linear(OUT_C, OUT_C)
        bfc=nrm((1, OUT_C), 0.01),
        lng=jnp.ones((1, OUT_C), jnp.float32) + nrm((1, OUT_C), 0.01),
        lnb=nrm((1, OUT_C), 0.01),
    )

    rgbd_feat = jax.random.normal(next(keys), (B, D, h, w), dtype=jnp.float32)

    ref = ref_forward(rgbd_feat, layer_params, pool_params, N_HEAD)

    # Performance path: bf16 MXU inputs, f32 accumulation, approx reciprocal.
    out = clve_forward(rgbd_feat, layer_params, pool_params, N_HEAD,
                       compute_dtype=jnp.bfloat16)
    out = jax.block_until_ready(out)
    np.testing.assert_allclose(np.asarray(out), np.asarray(ref),
                               rtol=3e-2, atol=3e-2)

    # Full-precision path (exact reciprocal): tight structural check.
    out_f32 = clve_forward(rgbd_feat, layer_params, pool_params, N_HEAD,
                           compute_dtype=jnp.float32)
    out_f32 = jax.block_until_ready(out_f32)
    np.testing.assert_allclose(np.asarray(out_f32), np.asarray(ref),
                               rtol=5e-3, atol=5e-3)

    assert out.shape == (B, OUT_C)
    print("KERNEL_OK")
</pallas_src>

<mosaic_0001>
module attributes {stable_mosaic.version = 11 : i64} {
  func.func @clve_fused_kernel(%arg0: i32, %arg1: memref<1x8x32xf32, #tpu.memory_space<vmem>>, %arg2: memref<1x32xf32, #tpu.memory_space<vmem>>, %arg3: memref<1x32xf32, #tpu.memory_space<vmem>>, %arg4: memref<32x96xbf16, #tpu.memory_space<vmem>>, %arg5: memref<1x96xf32, #tpu.memory_space<vmem>>, %arg6: memref<32x32xbf16, #tpu.memory_space<vmem>>, %arg7: memref<1x32xf32, #tpu.memory_space<vmem>>, %arg8: memref<1x32xf32, #tpu.memory_space<vmem>>, %arg9: memref<1x32xf32, #tpu.memory_space<vmem>>, %arg10: memref<32x128xbf16, #tpu.memory_space<any>>, %arg11: memref<1x128xf32, #tpu.memory_space<vmem>>, %arg12: memref<128x32xbf16, #tpu.memory_space<any>>, %arg13: memref<1x32xf32, #tpu.memory_space<vmem>>, %arg14: memref<8x1xf32, #tpu.memory_space<vmem>>, %arg15: memref<1x1xf32, #tpu.memory_space<vmem>>, %arg16: memref<32x16xf32, #tpu.memory_space<vmem>>, %arg17: memref<1x16xf32, #tpu.memory_space<vmem>>, %arg18: memref<16x16xf32, #tpu.memory_space<vmem>>, %arg19: memref<1x16xf32, #tpu.memory_space<vmem>>, %arg20: memref<1x16xf32, #tpu.memory_space<vmem>>, %arg21: memref<1x16xf32, #tpu.memory_space<vmem>>, %arg22: memref<1x1x16xf32, #tpu.memory_space<vmem>>, %arg23: memref<8x32xbf16, #tpu.memory_space<vmem>>, %arg24: memref<32x128xbf16, #tpu.memory_space<vmem>>, %arg25: memref<128x32xbf16, #tpu.memory_space<vmem>>, %arg26: memref<2x!tpu.dma_semaphore, #tpu.memory_space<semaphore_mem>>) attributes {dimension_semantics = [#tpu.dimension_semantics<parallel>], iteration_bounds = array<i64: 2>, scalar_prefetch = 0 : i64, scratch_operands = 4 : i64, tpu.core_type = #tpu.core_type<tc>, window_params = [{transform_indices = @transform_0, window_bounds = array<i64: 1, 8, 32>}, {pipeline_mode = #tpu.pipeline_mode<synchronous>, transform_indices = @transform_1, window_bounds = array<i64: 1, 32>}, {pipeline_mode = #tpu.pipeline_mode<synchronous>, transform_indices = @transform_2, window_bounds = array<i64: 1, 32>}, {pipeline_mode = #tpu.pipeline_mode<synchronous>, transform_indices = @transform_3, window_bounds = array<i64: 32, 96>}, {pipeline_mode = #tpu.pipeline_mode<synchronous>, transform_indices = @transform_4, window_bounds = array<i64: 1, 96>}, {pipeline_mode = #tpu.pipeline_mode<synchronous>, transform_indices = @transform_5, window_bounds = array<i64: 32, 32>}, {pipeline_mode = #tpu.pipeline_mode<synchronous>, transform_indices = @transform_6, window_bounds = array<i64: 1, 32>}, {pipeline_mode = #tpu.pipeline_mode<synchronous>, transform_indices = @transform_7, window_bounds = array<i64: 1, 32>}, {pipeline_mode = #tpu.pipeline_mode<synchronous>, transform_indices = @transform_8, window_bounds = array<i64: 1, 32>}, {}, {pipeline_mode = #tpu.pipeline_mode<synchronous>, transform_indices = @transform_10, window_bounds = array<i64: 1, 128>}, {}, {pipeline_mode = #tpu.pipeline_mode<synchronous>, transform_indices = @transform_12, window_bounds = array<i64: 1, 32>}, {pipeline_mode = #tpu.pipeline_mode<synchronous>, transform_indices = @transform_13, window_bounds = array<i64: 8, 1>}, {pipeline_mode = #tpu.pipeline_mode<synchronous>, transform_indices = @transform_14, window_bounds = array<i64: 1, 1>}, {pipeline_mode = #tpu.pipeline_mode<synchronous>, transform_indices = @transform_15, window_bounds = array<i64: 32, 16>}, {pipeline_mode = #tpu.pipeline_mode<synchronous>, transform_indices = @transform_16, window_bounds = array<i64: 1, 16>}, {pipeline_mode = #tpu.pipeline_mode<synchronous>, transform_indices = @transform_17, window_bounds = array<i64: 16, 16>}, {pipeline_mode = #tpu.pipeline_mode<synchronous>, transform_indices = @transform_18, window_bounds = array<i64: 1, 16>}, {pipeline_mode = #tpu.pipeline_mode<synchronous>, transform_indices = @transform_19, window_bounds = array<i64: 1, 16>}, {pipeline_mode = #tpu.pipeline_mode<synchronous>, transform_indices = @transform_20, window_bounds = array<i64: 1, 16>}, {transform_indices = @transform_21, window_bounds = array<i64: 1, 1, 16>}]} {
    %c0_i32 = arith.constant 0 : i32
    %0 = tpu.memref_slice %arg26[%c0_i32] : memref<2x!tpu.dma_semaphore, #tpu.memory_space<semaphore_mem>> -> memref<1x!tpu.dma_semaphore, #tpu.memory_space<semaphore_mem>>
    %1 = tpu.memref_squeeze %0 : memref<1x!tpu.dma_semaphore, #tpu.memory_space<semaphore_mem>> -> memref<!tpu.dma_semaphore, #tpu.memory_space<semaphore_mem>>
    tpu.enqueue_dma source(%arg10 : memref<32x128xbf16, #tpu.memory_space<any>>) target(%arg24 : memref<32x128xbf16, #tpu.memory_space<vmem>>) target_semaphore(%1 : memref<!tpu.dma_semaphore, #tpu.memory_space<semaphore_mem>>)
    %c1_i32 = arith.constant 1 : i32
    %2 = tpu.memref_slice %arg26[%c1_i32] : memref<2x!tpu.dma_semaphore, #tpu.memory_space<semaphore_mem>> -> memref<1x!tpu.dma_semaphore, #tpu.memory_space<semaphore_mem>>
    %3 = tpu.memref_squeeze %2 : memref<1x!tpu.dma_semaphore, #tpu.memory_space<semaphore_mem>> -> memref<!tpu.dma_semaphore, #tpu.memory_space<semaphore_mem>>
    tpu.enqueue_dma source(%arg12 : memref<128x32xbf16, #tpu.memory_space<any>>) target(%arg25 : memref<128x32xbf16, #tpu.memory_space<vmem>>) target_semaphore(%3 : memref<!tpu.dma_semaphore, #tpu.memory_space<semaphore_mem>>)
    %c0 = arith.constant 0 : index
    %c0_0 = arith.constant 0 : index
    %c0_1 = arith.constant 0 : index
    %4 = vector.load %arg1[%c0, %c0_0, %c0_1] : memref<1x8x32xf32, #tpu.memory_space<vmem>>, vector<1x8x32xf32>
    %5 = vector.shape_cast %4 : vector<1x8x32xf32> to vector<8x32xf32>
    %cst = arith.constant dense<0.000000e+00> : vector<8xf32>
    %6 = vector.multi_reduction <add>, %5, %cst [1] : vector<8x32xf32> to vector<8xf32>
    %7 = vector.shape_cast %6 : vector<8xf32> to vector<8x1xf32>
    %cst_2 = arith.constant 3.200000e+01 : f32
    %8 = vector.broadcast %cst_2 : f32 to vector<8x1xf32>
    %9 = arith.divf %7, %8 : vector<8x1xf32>
    %10 = vector.broadcast %9 : vector<8x1xf32> to vector<8x32xf32>
    %11 = arith.subf %5, %10 : vector<8x32xf32>
    %12 = arith.mulf %11, %11 : vector<8x32xf32>
    %cst_3 = arith.constant dense<0.000000e+00> : vector<8xf32>
    %13 = vector.multi_reduction <add>, %12, %cst_3 [1] : vector<8x32xf32> to vector<8xf32>
    %14 = vector.shape_cast %13 : vector<8xf32> to vector<8x1xf32>
    %cst_4 = arith.constant 3.200000e+01 : f32
    %15 = vector.broadcast %cst_4 : f32 to vector<8x1xf32>
    %16 = arith.divf %14, %15 : vector<8x1xf32>
    %17 = vector.broadcast %9 : vector<8x1xf32> to vector<8x32xf32>
    %18 = arith.subf %5, %17 : vector<8x32xf32>
    %cst_5 = arith.constant 9.99999974E-6 : f32
    %19 = vector.broadcast %cst_5 : f32 to vector<8x1xf32>
    %20 = arith.addf %16, %19 : vector<8x1xf32>
    %21 = math.rsqrt %20 : vector<8x1xf32>
    %22 = vector.broadcast %21 : vector<8x1xf32> to vector<8x32xf32>
    %23 = arith.mulf %18, %22 : vector<8x32xf32>
    %c0_6 = arith.constant 0 : index
    %c0_7 = arith.constant 0 : index
    %24 = vector.load %arg2[%c0_6, %c0_7] : memref<1x32xf32, #tpu.memory_space<vmem>>, vector<1x32xf32>
    %25 = vector.broadcast %24 : vector<1x32xf32> to vector<8x32xf32>
    %26 = arith.mulf %23, %25 : vector<8x32xf32>
    %c0_8 = arith.constant 0 : index
    %c0_9 = arith.constant 0 : index
    %27 = vector.load %arg3[%c0_8, %c0_9] : memref<1x32xf32, #tpu.memory_space<vmem>>, vector<1x32xf32>
    %28 = vector.broadcast %27 : vector<1x32xf32> to vector<8x32xf32>
    %29 = arith.addf %26, %28 : vector<8x32xf32>
    %30 = arith.truncf %29 : vector<8x32xf32> to vector<8x32xbf16>
    %c0_10 = arith.constant 0 : index
    %c0_11 = arith.constant 0 : index
    %31 = vector.load %arg4[%c0_10, %c0_11] : memref<32x96xbf16, #tpu.memory_space<vmem>>, vector<32x96xbf16>
    %cst_12 = arith.constant dense<0.000000e+00> : vector<8x96xf32>
    %32 = tpu.matmul %30, %31, %cst_12 {dimension_numbers = #tpu.dot_dimension_numbers<[1], [0], [0], [1], [0, 0, 1, 1], [], []>} : vector<8x32xbf16>, vector<32x96xbf16>, vector<8x96xf32> -> vector<8x96xf32>
    %c0_13 = arith.constant 0 : index
    %c0_14 = arith.constant 0 : index
    %33 = vector.load %arg5[%c0_13, %c0_14] : memref<1x96xf32, #tpu.memory_space<vmem>>, vector<1x96xf32>
    %34 = vector.broadcast %33 : vector<1x96xf32> to vector<8x96xf32>
    %35 = arith.addf %32, %34 : vector<8x96xf32>
    %36 = vector.extract_strided_slice %35 {offsets = [0, 0], sizes = [8, 32], strides = [1, 1]} : vector<8x96xf32> to vector<8x32xf32>
    %37 = vector.extract_strided_slice %35 {offsets = [0, 32], sizes = [8, 32], strides = [1, 1]} : vector<8x96xf32> to vector<8x32xf32>
    %38 = vector.extract_strided_slice %35 {offsets = [0, 64], sizes = [8, 32], strides = [1, 1]} : vector<8x96xf32> to vector<8x32xf32>
    %39 = vector.extract_strided_slice %36 {offsets = [0, 0], sizes = [8, 8], strides = [1, 1]} : vector<8x32xf32> to vector<8x8xf32>
    %40 = arith.truncf %39 : vector<8x8xf32> to vector<8x8xbf16>
    %41 = vector.extract_strided_slice %37 {offsets = [0, 0], sizes = [8, 8], strides = [1, 1]} : vector<8x32xf32> to vector<8x8xf32>
    %42 = arith.truncf %41 : vector<8x8xf32> to vector<8x8xbf16>
    %43 = vector.extract_strided_slice %38 {offsets = [0, 0], sizes = [8, 8], strides = [1, 1]} : vector<8x32xf32> to vector<8x8xf32>
    %44 = arith.truncf %43 : vector<8x8xf32> to vector<8x8xbf16>
    %cst_15 = arith.constant dense<0.000000e+00> : vector<8x8xf32>
    %45 = tpu.matmul %40, %42, %cst_15 {dimension_numbers = #tpu.dot_dimension_numbers<[1], [1], [0], [0], [0, 0, 1, 0], [], []>} : vector<8x8xbf16>, vector<8x8xbf16>, vector<8x8xf32> -> vector<8x8xf32>
    %cst_16 = arith.constant 0.353553385 : f32
    %46 = vector.broadcast %cst_16 : f32 to vector<8x8xf32>
    %47 = arith.mulf %45, %46 : vector<8x8xf32>
    %cst_17 = arith.constant dense<0xFF800000> : vector<8xf32>
    %48 = vector.multi_reduction <maximumf>, %47, %cst_17 [1] : vector<8x8xf32> to vector<8xf32>
    %49 = vector.shape_cast %48 : vector<8xf32> to vector<8x1xf32>
    %50 = vector.broadcast %49 : vector<8x1xf32> to vector<8x8xf32>
    %51 = arith.subf %47, %50 : vector<8x8xf32>
    %52 = math.exp %51 : vector<8x8xf32>
    %cst_18 = arith.constant dense<0.000000e+00> : vector<8xf32>
    %53 = vector.multi_reduction <add>, %52, %cst_18 [1] : vector<8x8xf32> to vector<8xf32>
    %54 = vector.shape_cast %53 : vector<8xf32> to vector<8x1xf32>
    %55 = tpu.reciprocal %54 {approx = true} : vector<8x1xf32> -> vector<8x1xf32>
    %56 = vector.broadcast %55 : vector<8x1xf32> to vector<8x8xf32>
    %57 = arith.mulf %52, %56 : vector<8x8xf32>
    %58 = arith.truncf %57 : vector<8x8xf32> to vector<8x8xbf16>
    %cst_19 = arith.constant dense<0.000000e+00> : vector<8x8xf32>
    %59 = tpu.matmul %58, %44, %cst_19 {dimension_numbers = #tpu.dot_dimension_numbers<[1], [0], [0], [1], [0, 0, 1, 1], [], []>} : vector<8x8xbf16>, vector<8x8xbf16>, vector<8x8xf32> -> vector<8x8xf32>
    %60 = arith.truncf %59 : vector<8x8xf32> to vector<8x8xbf16>
    %c0_20 = arith.constant 0 : index
    %c0_21 = arith.constant 0 : index
    %61 = vector.load %arg23[%c0_20, %c0_21] : memref<8x32xbf16, #tpu.memory_space<vmem>>, vector<8x8xbf16>
    tpu.vector_store %arg23[%c0_20, %c0_21], %60 {strides = array<i32>} : memref<8x32xbf16, #tpu.memory_space<vmem>>, vector<8x8xbf16>,
    %62 = vector.extract_strided_slice %36 {offsets = [0, 8], sizes = [8, 8], strides = [1, 1]} : vector<8x32xf32> to vector<8x8xf32>
    %63 = arith.truncf %62 : vector<8x8xf32> to vector<8x8xbf16>
    %64 = vector.extract_strided_slice %37 {offsets = [0, 8], sizes = [8, 8], strides = [1, 1]} : vector<8x32xf32> to vector<8x8xf32>
    %65 = arith.truncf %64 : vector<8x8xf32> to vector<8x8xbf16>
    %66 = vector.extract_strided_slice %38 {offsets = [0, 8], sizes = [8, 8], strides = [1, 1]} : vector<8x32xf32> to vector<8x8xf32>
    %67 = arith.truncf %66 : vector<8x8xf32> to vector<8x8xbf16>
    %cst_22 = arith.constant dense<0.000000e+00> : vector<8x8xf32>
    %68 = tpu.matmul %63, %65, %cst_22 {dimension_numbers = #tpu.dot_dimension_numbers<[1], [1], [0], [0], [0, 0, 1, 0], [], []>} : vector<8x8xbf16>, vector<8x8xbf16>, vector<8x8xf32> -> vector<8x8xf32>
    %cst_23 = arith.constant 0.353553385 : f32
    %69 = vector.broadcast %cst_23 : f32 to vector<8x8xf32>
    %70 = arith.mulf %68, %69 : vector<8x8xf32>
    %cst_24 = arith.constant dense<0xFF800000> : vector<8xf32>
    %71 = vector.multi_reduction <maximumf>, %70, %cst_24 [1] : vector<8x8xf32> to vector<8xf32>
    %72 = vector.shape_cast %71 : vector<8xf32> to vector<8x1xf32>
    %73 = vector.broadcast %72 : vector<8x1xf32> to vector<8x8xf32>
    %74 = arith.subf %70, %73 : vector<8x8xf32>
    %75 = math.exp %74 : vector<8x8xf32>
    %cst_25 = arith.constant dense<0.000000e+00> : vector<8xf32>
    %76 = vector.multi_reduction <add>, %75, %cst_25 [1] : vector<8x8xf32> to vector<8xf32>
    %77 = vector.shape_cast %76 : vector<8xf32> to vector<8x1xf32>
    %78 = tpu.reciprocal %77 {approx = true} : vector<8x1xf32> -> vector<8x1xf32>
    %79 = vector.broadcast %78 : vector<8x1xf32> to vector<8x8xf32>
    %80 = arith.mulf %75, %79 : vector<8x8xf32>
    %81 = arith.truncf %80 : vector<8x8xf32> to vector<8x8xbf16>
    %cst_26 = arith.constant dense<0.000000e+00> : vector<8x8xf32>
    %82 = tpu.matmul %81, %67, %cst_26 {dimension_numbers = #tpu.dot_dimension_numbers<[1], [0], [0], [1], [0, 0, 1, 1], [], []>} : vector<8x8xbf16>, vector<8x8xbf16>, vector<8x8xf32> -> vector<8x8xf32>
    %83 = arith.truncf %82 : vector<8x8xf32> to vector<8x8xbf16>
    %c0_27 = arith.constant 0 : index
    %c8 = arith.constant 8 : index
    %84 = vector.load %arg23[%c0_27, %c8] : memref<8x32xbf16, #tpu.memory_space<vmem>>, vector<8x8xbf16>
    tpu.vector_store %arg23[%c0_27, %c8], %83 {strides = array<i32>} : memref<8x32xbf16, #tpu.memory_space<vmem>>, vector<8x8xbf16>,
    %85 = vector.extract_strided_slice %36 {offsets = [0, 16], sizes = [8, 8], strides = [1, 1]} : vector<8x32xf32> to vector<8x8xf32>
    %86 = arith.truncf %85 : vector<8x8xf32> to vector<8x8xbf16>
    %87 = vector.extract_strided_slice %37 {offsets = [0, 16], sizes = [8, 8], strides = [1, 1]} : vector<8x32xf32> to vector<8x8xf32>
    %88 = arith.truncf %87 : vector<8x8xf32> to vector<8x8xbf16>
    %89 = vector.extract_strided_slice %38 {offsets = [0, 16], sizes = [8, 8], strides = [1, 1]} : vector<8x32xf32> to vector<8x8xf32>
    %90 = arith.truncf %89 : vector<8x8xf32> to vector<8x8xbf16>
    %cst_28 = arith.constant dense<0.000000e+00> : vector<8x8xf32>
    %91 = tpu.matmul %86, %88, %cst_28 {dimension_numbers = #tpu.dot_dimension_numbers<[1], [1], [0], [0], [0, 0, 1, 0], [], []>} : vector<8x8xbf16>, vector<8x8xbf16>, vector<8x8xf32> -> vector<8x8xf32>
    %cst_29 = arith.constant 0.353553385 : f32
    %92 = vector.broadcast %cst_29 : f32 to vector<8x8xf32>
    %93 = arith.mulf %91, %92 : vector<8x8xf32>
    %cst_30 = arith.constant dense<0xFF800000> : vector<8xf32>
    %94 = vector.multi_reduction <maximumf>, %93, %cst_30 [1] : vector<8x8xf32> to vector<8xf32>
    %95 = vector.shape_cast %94 : vector<8xf32> to vector<8x1xf32>
    %96 = vector.broadcast %95 : vector<8x1xf32> to vector<8x8xf32>
    %97 = arith.subf %93, %96 : vector<8x8xf32>
    %98 = math.exp %97 : vector<8x8xf32>
    %cst_31 = arith.constant dense<0.000000e+00> : vector<8xf32>
    %99 = vector.multi_reduction <add>, %98, %cst_31 [1] : vector<8x8xf32> to vector<8xf32>
    %100 = vector.shape_cast %99 : vector<8xf32> to vector<8x1xf32>
    %101 = tpu.reciprocal %100 {approx = true} : vector<8x1xf32> -> vector<8x1xf32>
    %102 = vector.broadcast %101 : vector<8x1xf32> to vector<8x8xf32>
    %103 = arith.mulf %98, %102 : vector<8x8xf32>
    %104 = arith.truncf %103 : vector<8x8xf32> to vector<8x8xbf16>
    %cst_32 = arith.constant dense<0.000000e+00> : vector<8x8xf32>
    %105 = tpu.matmul %104, %90, %cst_32 {dimension_numbers = #tpu.dot_dimension_numbers<[1], [0], [0], [1], [0, 0, 1, 1], [], []>} : vector<8x8xbf16>, vector<8x8xbf16>, vector<8x8xf32> -> vector<8x8xf32>
    %106 = arith.truncf %105 : vector<8x8xf32> to vector<8x8xbf16>
    %c0_33 = arith.constant 0 : index
    %c16 = arith.constant 16 : index
    %107 = vector.load %arg23[%c0_33, %c16] : memref<8x32xbf16, #tpu.memory_space<vmem>>, vector<8x8xbf16>
    tpu.vector_store %arg23[%c0_33, %c16], %106 {strides = array<i32>} : memref<8x32xbf16, #tpu.memory_space<vmem>>, vector<8x8xbf16>,
    %108 = vector.extract_strided_slice %36 {offsets = [0, 24], sizes = [8, 8], strides = [1, 1]} : vector<8x32xf32> to vector<8x8xf32>
    %109 = arith.truncf %108 : vector<8x8xf32> to vector<8x8xbf16>
    %110 = vector.extract_strided_slice %37 {offsets = [0, 24], sizes = [8, 8], strides = [1, 1]} : vector<8x32xf32> to vector<8x8xf32>
    %111 = arith.truncf %110 : vector<8x8xf32> to vector<8x8xbf16>
    %112 = vector.extract_strided_slice %38 {offsets = [0, 24], sizes = [8, 8], strides = [1, 1]} : vector<8x32xf32> to vector<8x8xf32>
    %113 = arith.truncf %112 : vector<8x8xf32> to vector<8x8xbf16>
    %cst_34 = arith.constant dense<0.000000e+00> : vector<8x8xf32>
    %114 = tpu.matmul %109, %111, %cst_34 {dimension_numbers = #tpu.dot_dimension_numbers<[1], [1], [0], [0], [0, 0, 1, 0], [], []>} : vector<8x8xbf16>, vector<8x8xbf16>, vector<8x8xf32> -> vector<8x8xf32>
    %cst_35 = arith.constant 0.353553385 : f32
    %115 = vector.broadcast %cst_35 : f32 to vector<8x8xf32>
    %116 = arith.mulf %114, %115 : vector<8x8xf32>
    %cst_36 = arith.constant dense<0xFF800000> : vector<8xf32>
    %117 = vector.multi_reduction <maximumf>, %116, %cst_36 [1] : vector<8x8xf32> to vector<8xf32>
    %118 = vector.shape_cast %117 : vector<8xf32> to vector<8x1xf32>
    %119 = vector.broadcast %118 : vector<8x1xf32> to vector<8x8xf32>
    %120 = arith.subf %116, %119 : vector<8x8xf32>
    %121 = math.exp %120 : vector<8x8xf32>
    %cst_37 = arith.constant dense<0.000000e+00> : vector<8xf32>
    %122 = vector.multi_reduction <add>, %121, %cst_37 [1] : vector<8x8xf32> to vector<8xf32>
    %123 = vector.shape_cast %122 : vector<8xf32> to vector<8x1xf32>
    %124 = tpu.reciprocal %123 {approx = true} : vector<8x1xf32> -> vector<8x1xf32>
    %125 = vector.broadcast %124 : vector<8x1xf32> to vector<8x8xf32>
    %126 = arith.mulf %121, %125 : vector<8x8xf32>
    %127 = arith.truncf %126 : vector<8x8xf32> to vector<8x8xbf16>
    %cst_38 = arith.constant dense<0.000000e+00> : vector<8x8xf32>
    %128 = tpu.matmul %127, %113, %cst_38 {dimension_numbers = #tpu.dot_dimension_numbers<[1], [0], [0], [1], [0, 0, 1, 1], [], []>} : vector<8x8xbf16>, vector<8x8xbf16>, vector<8x8xf32> -> vector<8x8xf32>
    %129 = arith.truncf %128 : vector<8x8xf32> to vector<8x8xbf16>
    %c0_39 = arith.constant 0 : index
    %c24 = arith.constant 24 : index
    %130 = vector.load %arg23[%c0_39, %c24] : memref<8x32xbf16, #tpu.memory_space<vmem>>, vector<8x8xbf16>
    tpu.vector_store %arg23[%c0_39, %c24], %129 {strides = array<i32>} : memref<8x32xbf16, #tpu.memory_space<vmem>>, vector<8x8xbf16>,
    %c0_40 = arith.constant 0 : index
    %c0_41 = arith.constant 0 : index
    %131 = vector.load %arg23[%c0_40, %c0_41] : memref<8x32xbf16, #tpu.memory_space<vmem>>, vector<8x32xbf16>
    %c0_42 = arith.constant 0 : index
    %c0_43 = arith.constant 0 : index
    %132 = vector.load %arg6[%c0_42, %c0_43] : memref<32x32xbf16, #tpu.memory_space<vmem>>, vector<32x32xbf16>
    %cst_44 = arith.constant dense<0.000000e+00> : vector<8x32xf32>
    %133 = tpu.matmul %131, %132, %cst_44 {dimension_numbers = #tpu.dot_dimension_numbers<[1], [0], [0], [1], [0, 0, 1, 1], [], []>} : vector<8x32xbf16>, vector<32x32xbf16>, vector<8x32xf32> -> vector<8x32xf32>
    %c0_45 = arith.constant 0 : index
    %c0_46 = arith.constant 0 : index
    %134 = vector.load %arg7[%c0_45, %c0_46] : memref<1x32xf32, #tpu.memory_space<vmem>>, vector<1x32xf32>
    %135 = vector.broadcast %134 : vector<1x32xf32> to vector<8x32xf32>
    %136 = arith.addf %133, %135 : vector<8x32xf32>
    %137 = arith.addf %136, %5 : vector<8x32xf32>
    %cst_47 = arith.constant dense<0.000000e+00> : vector<8xf32>
    %138 = vector.multi_reduction <add>, %137, %cst_47 [1] : vector<8x32xf32> to vector<8xf32>
    %139 = vector.shape_cast %138 : vector<8xf32> to vector<8x1xf32>
    %cst_48 = arith.constant 3.200000e+01 : f32
    %140 = vector.broadcast %cst_48 : f32 to vector<8x1xf32>
    %141 = arith.divf %139, %140 : vector<8x1xf32>
    %142 = vector.broadcast %141 : vector<8x1xf32> to vector<8x32xf32>
    %143 = arith.subf %137, %142 : vector<8x32xf32>
    %144 = arith.mulf %143, %143 : vector<8x32xf32>
    %cst_49 = arith.constant dense<0.000000e+00> : vector<8xf32>
    %145 = vector.multi_reduction <add>, %144, %cst_49 [1] : vector<8x32xf32> to vector<8xf32>
    %146 = vector.shape_cast %145 : vector<8xf32> to vector<8x1xf32>
    %cst_50 = arith.constant 3.200000e+01 : f32
    %147 = vector.broadcast %cst_50 : f32 to vector<8x1xf32>
    %148 = arith.divf %146, %147 : vector<8x1xf32>
    %149 = vector.broadcast %141 : vector<8x1xf32> to vector<8x32xf32>
    %150 = arith.subf %137, %149 : vector<8x32xf32>
    %cst_51 = arith.constant 9.99999974E-6 : f32
    %151 = vector.broadcast %cst_51 : f32 to vector<8x1xf32>
    %152 = arith.addf %148, %151 : vector<8x1xf32>
    %153 = math.rsqrt %152 : vector<8x1xf32>
    %154 = vector.broadcast %153 : vector<8x1xf32> to vector<8x32xf32>
    %155 = arith.mulf %150, %154 : vector<8x32xf32>
    %c0_52 = arith.constant 0 : index
    %c0_53 = arith.constant 0 : index
    %156 = vector.load %arg8[%c0_52, %c0_53] : memref<1x32xf32, #tpu.memory_space<vmem>>, vector<1x32xf32>
    %157 = vector.broadcast %156 : vector<1x32xf32> to vector<8x32xf32>
    %158 = arith.mulf %155, %157 : vector<8x32xf32>
    %c0_54 = arith.constant 0 : index
    %c0_55 = arith.constant 0 : index
    %159 = vector.load %arg9[%c0_54, %c0_55] : memref<1x32xf32, #tpu.memory_space<vmem>>, vector<1x32xf32>
    %160 = vector.broadcast %159 : vector<1x32xf32> to vector<8x32xf32>
    %161 = arith.addf %158, %160 : vector<8x32xf32>
    %c0_i32_56 = arith.constant 0 : i32
    %162 = tpu.memref_slice %arg26[%c0_i32_56] : memref<2x!tpu.dma_semaphore, #tpu.memory_space<semaphore_mem>> -> memref<1x!tpu.dma_semaphore, #tpu.memory_space<semaphore_mem>>
    %163 = tpu.memref_squeeze %162 : memref<1x!tpu.dma_semaphore, #tpu.memory_space<semaphore_mem>> -> memref<!tpu.dma_semaphore, #tpu.memory_space<semaphore_mem>>
    tpu.wait_dma2 semaphore(%163 : memref<!tpu.dma_semaphore, #tpu.memory_space<semaphore_mem>>) src(%arg10 : memref<32x128xbf16, #tpu.memory_space<any>>) dst(%arg24 : memref<32x128xbf16, #tpu.memory_space<vmem>>)
    %164 = arith.truncf %161 : vector<8x32xf32> to vector<8x32xbf16>
    %c0_57 = arith.constant 0 : index
    %c0_58 = arith.constant 0 : index
    %165 = vector.load %arg24[%c0_57, %c0_58] : memref<32x128xbf16, #tpu.memory_space<vmem>>, vector<32x128xbf16>
    %cst_59 = arith.constant dense<0.000000e+00> : vector<8x128xf32>
    %166 = tpu.matmul %164, %165, %cst_59 {dimension_numbers = #tpu.dot_dimension_numbers<[1], [0], [0], [1], [0, 0, 1, 1], [], []>} : vector<8x32xbf16>, vector<32x128xbf16>, vector<8x128xf32> -> vector<8x128xf32>
    %c0_60 = arith.constant 0 : index
    %c0_61 = arith.constant 0 : index
    %167 = vector.load %arg11[%c0_60, %c0_61] : memref<1x128xf32, #tpu.memory_space<vmem>>, vector<1x128xf32>
    %168 = vector.broadcast %167 : vector<1x128xf32> to vector<8x128xf32>
    %169 = arith.addf %166, %168 : vector<8x128xf32>
    %cst_62 = arith.constant 1.702000e+00 : f32
    %170 = vector.broadcast %cst_62 : f32 to vector<8x128xf32>
    %171 = arith.mulf %170, %169 : vector<8x128xf32>
    %172 = arith.negf %171 : vector<8x128xf32>
    %173 = math.exp %172 : vector<8x128xf32>
    %cst_63 = arith.constant 1.000000e+00 : f32
    %174 = vector.broadcast %cst_63 : f32 to vector<8x128xf32>
    %175 = arith.addf %174, %173 : vector<8x128xf32>
    %176 = arith.divf %174, %175 : vector<8x128xf32>
    %177 = arith.mulf %169, %176 : vector<8x128xf32>
    %c1_i32_64 = arith.constant 1 : i32
    %178 = tpu.memref_slice %arg26[%c1_i32_64] : memref<2x!tpu.dma_semaphore, #tpu.memory_space<semaphore_mem>> -> memref<1x!tpu.dma_semaphore, #tpu.memory_space<semaphore_mem>>
    %179 = tpu.memref_squeeze %178 : memref<1x!tpu.dma_semaphore, #tpu.memory_space<semaphore_mem>> -> memref<!tpu.dma_semaphore, #tpu.memory_space<semaphore_mem>>
    tpu.wait_dma2 semaphore(%179 : memref<!tpu.dma_semaphore, #tpu.memory_space<semaphore_mem>>) src(%arg12 : memref<128x32xbf16, #tpu.memory_space<any>>) dst(%arg25 : memref<128x32xbf16, #tpu.memory_space<vmem>>)
    %180 = arith.truncf %177 : vector<8x128xf32> to vector<8x128xbf16>
    %c0_65 = arith.constant 0 : index
    %c0_66 = arith.constant 0 : index
    %181 = vector.load %arg25[%c0_65, %c0_66] : memref<128x32xbf16, #tpu.memory_space<vmem>>, vector<128x32xbf16>
    %cst_67 = arith.constant dense<0.000000e+00> : vector<8x32xf32>
    %182 = tpu.matmul %180, %181, %cst_67 {dimension_numbers = #tpu.dot_dimension_numbers<[1], [0], [0], [1], [0, 0, 1, 1], [], []>} : vector<8x128xbf16>, vector<128x32xbf16>, vector<8x32xf32> -> vector<8x32xf32>
    %c0_68 = arith.constant 0 : index
    %c0_69 = arith.constant 0 : index
    %183 = vector.load %arg13[%c0_68, %c0_69] : memref<1x32xf32, #tpu.memory_space<vmem>>, vector<1x32xf32>
    %184 = vector.broadcast %183 : vector<1x32xf32> to vector<8x32xf32>
    %185 = arith.addf %182, %184 : vector<8x32xf32>
    %186 = arith.addf %185, %137 : vector<8x32xf32>
    %c0_70 = arith.constant 0 : index
    %c0_71 = arith.constant 0 : index
    %187 = vector.load %arg14[%c0_70, %c0_71] : memref<8x1xf32, #tpu.memory_space<vmem>>, vector<8x1xf32>
    %188 = vector.broadcast %187 : vector<8x1xf32> to vector<8x32xf32>
    %189 = arith.mulf %186, %188 : vector<8x32xf32>
    %cst_72 = arith.constant dense<0.000000e+00> : vector<32xf32>
    %190 = vector.multi_reduction <add>, %189, %cst_72 [0] : vector<8x32xf32> to vector<32xf32>
    %191 = vector.shape_cast %190 : vector<32xf32> to vector<1x32xf32>
    %c0_73 = arith.constant 0 : index
    %c0_74 = arith.constant 0 : index
    %192 = vector.load %arg15[%c0_73, %c0_74] : memref<1x1xf32, #tpu.memory_space<vmem>>, vector<1x1xf32>
    %193 = vector.broadcast %192 : vector<1x1xf32> to vector<1x32xf32>
    %194 = arith.addf %191, %193 : vector<1x32xf32>
    %c0_75 = arith.constant 0 : index
    %c0_76 = arith.constant 0 : index
    %195 = vector.load %arg16[%c0_75, %c0_76] : memref<32x16xf32, #tpu.memory_space<vmem>>, vector<32x16xf32>
    %cst_77 = arith.constant dense<0.000000e+00> : vector<1x16xf32>
    %196 = tpu.matmul %194, %195, %cst_77 {dimension_numbers = #tpu.dot_dimension_numbers<[1], [0], [0], [1], [0, 0, 1, 1], [], []>} : vector<1x32xf32>, vector<32x16xf32>, vector<1x16xf32> -> vector<1x16xf32>
    %c0_78 = arith.constant 0 : index
    %c0_79 = arith.constant 0 : index
    %197 = vector.load %arg17[%c0_78, %c0_79] : memref<1x16xf32, #tpu.memory_space<vmem>>, vector<1x16xf32>
    %198 = arith.addf %196, %197 : vector<1x16xf32>
    %cst_80 = arith.constant 1.702000e+00 : f32
    %199 = vector.broadcast %cst_80 : f32 to vector<1x16xf32>
    %200 = arith.mulf %199, %198 : vector<1x16xf32>
    %201 = arith.negf %200 : vector<1x16xf32>
    %202 = math.exp %201 : vector<1x16xf32>
    %cst_81 = arith.constant 1.000000e+00 : f32
    %203 = vector.broadcast %cst_81 : f32 to vector<1x16xf32>
    %204 = arith.addf %203, %202 : vector<1x16xf32>
    %205 = arith.divf %203, %204 : vector<1x16xf32>
    %206 = arith.mulf %198, %205 : vector<1x16xf32>
    %c0_82 = arith.constant 0 : index
    %c0_83 = arith.constant 0 : index
    %207 = vector.load %arg18[%c0_82, %c0_83] : memref<16x16xf32, #tpu.memory_space<vmem>>, vector<16x16xf32>
    %cst_84 = arith.constant dense<0.000000e+00> : vector<1x16xf32>
    %208 = tpu.matmul %206, %207, %cst_84 {dimension_numbers = #tpu.dot_dimension_numbers<[1], [0], [0], [1], [0, 0, 1, 1], [], []>} : vector<1x16xf32>, vector<16x16xf32>, vector<1x16xf32> -> vector<1x16xf32>
    %c0_85 = arith.constant 0 : index
    %c0_86 = arith.constant 0 : index
    %209 = vector.load %arg19[%c0_85, %c0_86] : memref<1x16xf32, #tpu.memory_space<vmem>>, vector<1x16xf32>
    %210 = arith.addf %208, %209 : vector<1x16xf32>
    %211 = arith.addf %210, %198 : vector<1x16xf32>
    %cst_87 = arith.constant dense<0.000000e+00> : vector<1xf32>
    %212 = vector.multi_reduction <add>, %211, %cst_87 [1] : vector<1x16xf32> to vector<1xf32>
    %213 = vector.shape_cast %212 : vector<1xf32> to vector<1x1xf32>
    %cst_88 = arith.constant 1.600000e+01 : f32
    %214 = vector.broadcast %cst_88 : f32 to vector<1x1xf32>
    %215 = arith.divf %213, %214 : vector<1x1xf32>
    %216 = vector.broadcast %215 : vector<1x1xf32> to vector<1x16xf32>
    %217 = arith.subf %211, %216 : vector<1x16xf32>
    %218 = arith.mulf %217, %217 : vector<1x16xf32>
    %cst_89 = arith.constant dense<0.000000e+00> : vector<1xf32>
    %219 = vector.multi_reduction <add>, %218, %cst_89 [1] : vector<1x16xf32> to vector<1xf32>
    %220 = vector.shape_cast %219 : vector<1xf32> to vector<1x1xf32>
    %cst_90 = arith.constant 1.600000e+01 : f32
    %221 = vector.broadcast %cst_90 : f32 to vector<1x1xf32>
    %222 = arith.divf %220, %221 : vector<1x1xf32>
    %223 = vector.broadcast %215 : vector<1x1xf32> to vector<1x16xf32>
    %224 = arith.subf %211, %223 : vector<1x16xf32>
    %cst_91 = arith.constant 9.99999974E-6 : f32
    %225 = vector.broadcast %cst_91 : f32 to vector<1x1xf32>
    %226 = arith.addf %222, %225 : vector<1x1xf32>
    %227 = math.rsqrt %226 : vector<1x1xf32>
    %228 = vector.broadcast %227 : vector<1x1xf32> to vector<1x16xf32>
    %229 = arith.mulf %224, %228 : vector<1x16xf32>
    %c0_92 = arith.constant 0 : index
    %c0_93 = arith.constant 0 : index
    %230 = vector.load %arg20[%c0_92, %c0_93] : memref<1x16xf32, #tpu.memory_space<vmem>>, vector<1x16xf32>
    %231 = arith.mulf %229, %230 : vector<1x16xf32>
    %c0_94 = arith.constant 0 : index
    %c0_95 = arith.constant 0 : index
    %232 = vector.load %arg21[%c0_94, %c0_95] : memref<1x16xf32, #tpu.memory_space<vmem>>, vector<1x16xf32>
    %233 = arith.addf %231, %232 : vector<1x16xf32>
    %c0_96 = arith.constant 0 : index
    %c0_97 = arith.constant 0 : index
    %c0_98 = arith.constant 0 : index
    %234 = vector.load %arg22[%c0_96, %c0_97, %c0_98] : memref<1x1x16xf32, #tpu.memory_space<vmem>>, vector<1x1x16xf32>
    %235 = vector.shape_cast %234 : vector<1x1x16xf32> to vector<1x16xf32>
    %236 = vector.shape_cast %233 : vector<1x16xf32> to vector<1x1x16xf32>
    tpu.vector_store %arg22[%c0_96, %c0_97, %c0_98], %236 {strides = array<i32>} : memref<1x1x16xf32, #tpu.memory_space<vmem>>, vector<1x1x16xf32>,
    return
  }
  func.func @transform_0(%arg0: i32) -> (i32, i32, i32) {
    %c0_i32 = arith.constant 0 : i32
    %c0_i32_0 = arith.constant 0 : i32
    %c0_i32_1 = arith.constant 0 : i32
    return %arg0, %c0_i32, %c0_i32_0 : i32, i32, i32
  }
  func.func @transform_1(%arg0: i32) -> (i32, i32) {
    %c0_i32 = arith.constant 0 : i32
    %c0_i32_0 = arith.constant 0 : i32
    %c0_i32_1 = arith.constant 0 : i32
    return %c0_i32, %c0_i32_0 : i32, i32
  }
  func.func @transform_2(%arg0: i32) -> (i32, i32) {
    %c0_i32 = arith.constant 0 : i32
    %c0_i32_0 = arith.constant 0 : i32
    %c0_i32_1 = arith.constant 0 : i32
    return %c0_i32, %c0_i32_0 : i32, i32
  }
  func.func @transform_3(%arg0: i32) -> (i32, i32) {
    %c0_i32 = arith.constant 0 : i32
    %c0_i32_0 = arith.constant 0 : i32
    %c0_i32_1 = arith.constant 0 : i32
    return %c0_i32, %c0_i32_0 : i32, i32
  }
  func.func @transform_4(%arg0: i32) -> (i32, i32) {
    %c0_i32 = arith.constant 0 : i32
    %c0_i32_0 = arith.constant 0 : i32
    %c0_i32_1 = arith.constant 0 : i32
    return %c0_i32, %c0_i32_0 : i32, i32
  }
  func.func @transform_5(%arg0: i32) -> (i32, i32) {
    %c0_i32 = arith.constant 0 : i32
    %c0_i32_0 = arith.constant 0 : i32
    %c0_i32_1 = arith.constant 0 : i32
    return %c0_i32, %c0_i32_0 : i32, i32
  }
  func.func @transform_6(%arg0: i32) -> (i32, i32) {
    %c0_i32 = arith.constant 0 : i32
    %c0_i32_0 = arith.constant 0 : i32
    %c0_i32_1 = arith.constant 0 : i32
    return %c0_i32, %c0_i32_0 : i32, i32
  }
  func.func @transform_7(%arg0: i32) -> (i32, i32) {
    %c0_i32 = arith.constant 0 : i32
    %c0_i32_0 = arith.constant 0 : i32
    %c0_i32_1 = arith.constant 0 : i32
    return %c0_i32, %c0_i32_0 : i32, i32
  }
  func.func @transform_8(%arg0: i32) -> (i32, i32) {
    %c0_i32 = arith.constant 0 : i32
    %c0_i32_0 = arith.constant 0 : i32
    %c0_i32_1 = arith.constant 0 : i32
    return %c0_i32, %c0_i32_0 : i32, i32
  }
  func.func @transform_10(%arg0: i32) -> (i32, i32) {
    %c0_i32 = arith.constant 0 : i32
    %c0_i32_0 = arith.constant 0 : i32
    %c0_i32_1 = arith.constant 0 : i32
    return %c0_i32, %c0_i32_0 : i32, i32
  }
  func.func @transform_12(%arg0: i32) -> (i32, i32) {
    %c0_i32 = arith.constant 0 : i32
    %c0_i32_0 = arith.constant 0 : i32
    %c0_i32_1 = arith.constant 0 : i32
    return %c0_i32, %c0_i32_0 : i32, i32
  }
  func.func @transform_13(%arg0: i32) -> (i32, i32) {
    %c0_i32 = arith.constant 0 : i32
    %c0_i32_0 = arith.constant 0 : i32
    %c0_i32_1 = arith.constant 0 : i32
    return %c0_i32, %c0_i32_0 : i32, i32
  }
  func.func @transform_14(%arg0: i32) -> (i32, i32) {
    %c0_i32 = arith.constant 0 : i32
    %c0_i32_0 = arith.constant 0 : i32
    %c0_i32_1 = arith.constant 0 : i32
    return %c0_i32, %c0_i32_0 : i32, i32
  }
  func.func @transform_15(%arg0: i32) -> (i32, i32) {
    %c0_i32 = arith.constant 0 : i32
    %c0_i32_0 = arith.constant 0 : i32
    %c0_i32_1 = arith.constant 0 : i32
    return %c0_i32, %c0_i32_0 : i32, i32
  }
  func.func @transform_16(%arg0: i32) -> (i32, i32) {
    %c0_i32 = arith.constant 0 : i32
    %c0_i32_0 = arith.constant 0 : i32
    %c0_i32_1 = arith.constant 0 : i32
    return %c0_i32, %c0_i32_0 : i32, i32
  }
  func.func @transform_17(%arg0: i32) -> (i32, i32) {
    %c0_i32 = arith.constant 0 : i32
    %c0_i32_0 = arith.constant 0 : i32
    %c0_i32_1 = arith.constant 0 : i32
    return %c0_i32, %c0_i32_0 : i32, i32
  }
  func.func @transform_18(%arg0: i32) -> (i32, i32) {
    %c0_i32 = arith.constant 0 : i32
    %c0_i32_0 = arith.constant 0 : i32
    %c0_i32_1 = arith.constant 0 : i32
    return %c0_i32, %c0_i32_0 : i32, i32
  }
  func.func @transform_19(%arg0: i32) -> (i32, i32) {
    %c0_i32 = arith.constant 0 : i32
    %c0_i32_0 = arith.constant 0 : i32
    %c0_i32_1 = arith.constant 0 : i32
    return %c0_i32, %c0_i32_0 : i32, i32
  }
  func.func @transform_20(%arg0: i32) -> (i32, i32) {
    %c0_i32 = arith.constant 0 : i32
    %c0_i32_0 = arith.constant 0 : i32
    %c0_i32_1 = arith.constant 0 : i32
    return %c0_i32, %c0_i32_0 : i32, i32
  }
  func.func @transform_21(%arg0: i32) -> (i32, i32, i32) {
    %c0_i32 = arith.constant 0 : i32
    %c0_i32_0 = arith.constant 0 : i32
    %c0_i32_1 = arith.constant 0 : i32
    return %arg0, %c0_i32, %c0_i32_0 : i32, i32, i32
  }
}

</mosaic_0001>

<llo_original>
// kernel: tpu_custom_call.1
$region0: #{tpu_custom_call.1}
  #allocation0 [shape = 'u32[]', space=smem, size = 0x4, offset = 0x4, fixed_abs, tag = 'smem constant byte address 0x4 - core index']
  #allocation1 [shape = 'u32[72,128]{1,0:T(1,128)}', space=vmem, size = 0x9000, scoped, tag = 'internal scratch']
  #allocation2 [shape = 'bf16[8,32]{1,0:T(8,128)(2,1)}', space=vmem, size = 0x800, scoped, tag = 'scratch operand']
  #allocation3 [shape = 'bf16[32,128]{1,0:T(8,128)(2,1)}', space=vmem, size = 0x2000, scoped, tag = 'scratch operand']
  #allocation4 [shape = 'bf16[128,32]{1,0:T(8,128)(2,1)}', space=vmem, size = 0x8000, scoped, tag = 'scratch operand']
  #allocation5 [shape = 's32[2]{0}', space=sflag, size = 0x8, scoped, tag = 'scratch operand']
  #allocation6 [shape = 'f32[1,1]{1,0:T(1,128)S(1)}', space=vmem, size = 0x200, scoped, tag = 'scoped memory for tpu_custom_call.1']
  #allocation9 [shape = 's32[]', space=sflag, size = 0x4, offset = 0, fixed_abs, tag = 'sflag constant byte address 0x0 - dummy sync flag']
  #allocation10 [shape = 's32[]', space=sflag, size = 0x4, offset = 0, fixed_abs, tag = 'sflag constant byte address 0x0 - dummy sync flag']
  %s0 = inlined_call_operand.vmem [shape: f32[2,8,32], index: 0, kind: input, shape index: {}]
  %s1 = inlined_call_operand.vmem [shape: f32[1,32], index: 1, kind: input, shape index: {}]
  %s2 = inlined_call_operand.vmem [shape: f32[1,32], index: 2, kind: input, shape index: {}]
  %s3 = inlined_call_operand.vmem [shape: bf16[32,96], index: 3, kind: input, shape index: {}]
  %s4 = inlined_call_operand.vmem [shape: f32[1,96], index: 4, kind: input, shape index: {}]
  %s5 = inlined_call_operand.vmem [shape: bf16[32,32], index: 5, kind: input, shape index: {}]
  %s6 = inlined_call_operand.vmem [shape: f32[1,32], index: 6, kind: input, shape index: {}]
  %s7 = inlined_call_operand.vmem [shape: f32[1,32], index: 7, kind: input, shape index: {}]
  %s8 = inlined_call_operand.vmem [shape: f32[1,32], index: 8, kind: input, shape index: {}]
  %s9 = inlined_call_operand.vmem [shape: bf16[32,128], index: 9, kind: input, shape index: {}]
  %s10 = inlined_call_operand.vmem [shape: f32[1,128], index: 10, kind: input, shape index: {}]
  %s11 = inlined_call_operand.vmem [shape: bf16[128,32], index: 11, kind: input, shape index: {}]
  %s12 = inlined_call_operand.vmem [shape: f32[1,32], index: 12, kind: input, shape index: {}]
  %s13 = inlined_call_operand.vmem [shape: f32[8,1], index: 13, kind: input, shape index: {}]
  %s14 = inlined_call_operand.<no memory space> [shape: f32[1,1], index: 14, kind: input, shape index: {}]
  %s15 = inlined_call_operand.vmem [shape: f32[32,16], index: 15, kind: input, shape index: {}]
  %s16 = inlined_call_operand.vmem [shape: f32[1,16], index: 16, kind: input, shape index: {}]
  %s17 = inlined_call_operand.vmem [shape: f32[16,16], index: 17, kind: input, shape index: {}]
  %s18 = inlined_call_operand.vmem [shape: f32[1,16], index: 18, kind: input, shape index: {}]
  %s19 = inlined_call_operand.vmem [shape: f32[1,16], index: 19, kind: input, shape index: {}]
  %s20 = inlined_call_operand.vmem [shape: f32[1,16], index: 20, kind: input, shape index: {}]
  %s21 = inlined_call_operand.hbm [shape: f32[2,1,16], index: 21, kind: output, shape index: {}]
  %s22 = sld [smem:[#allocation0]]
  $region147: #{tpu_custom_call.1} parent=0
    _
  %s24 = ssub.s32 1, %s22
  %s25 = scalar_select 0, %s24, %s22
  %v26 = vstv %s14
  %27 = vst [vmem:[#allocation6] sm:$0x1] %v26
  $region1: #{tpu_custom_call.1} parent=0
    #allocation7 [shape = 'u8[1024]{0}', space=vmem, size = 0x400, scoped, tag = 'output window, operand 0']
    #allocation8 [shape = 's32[2]{0}', space=sflag, size = 0x8, scoped, tag = 'scoped memory for tpu_custom_call.1']
    %28 = vsyncpa [#allocation8], 0
    %s29 = scalar_lea.sflag [#allocation8], 1
    %30 = vsyncpa %s29, 0
    loop: start=0, step=1, limit=4
    $region2: #{tpu_custom_call.1} parent=1 // loop_pre_header
      _
    $region3: #{tpu_custom_call.1} parent=1 // loop_header
      %s32 = sphi 0, %s36
      %p33 = scmp.ge.s32.totalorder %s32, 4
      %s42 = sphi 0, %s44
      %s45 = sphi 0, %s42
      %s46 = sphi 0, %s45
      %s62 = sphi 0, %s46
      %s66 = sphi 0, %s66
      %s68 = sphi 0, %s66
      %s69 = sphi 0, %s68
      %s83 = sphi 0, %s69
      %s87 = sphi 0, %s87
      %s89 = sphi 0, %s87
      %s90 = sphi 0, %s89
      %s104 = sphi 0, %s90
      %s108 = sphi 0, %s108
      %s110 = sphi 0, %s108
      %s111 = sphi 0, %s110
      %s125 = sphi 0, %s111
      %s129 = sphi 0, %s129
      %s131 = sphi 0, %s129
      %s132 = sphi 0, %s131
      %s146 = sphi 0, %s132
      %s150 = sphi 0, %s150
      %s152 = sphi 0, %s150
      %s153 = sphi 0, %s152
      %s167 = sphi 0, %s153
      %s171 = sphi 0, %s171
      %s173 = sphi 0, %s171
      %s174 = sphi 0, %s173
      %s188 = sphi 0, %s174
      %s192 = sphi 0, %s192
      %s194 = sphi 0, %s192
      %s195 = sphi 0, %s194
      %s209 = sphi 0, %s195
      %s213 = sphi 0, %s213
      %s215 = sphi 0, %s213
      %s216 = sphi 0, %s215
      %s230 = sphi 0, %s216
      %s234 = sphi 0, %s234
      %s236 = sphi 0, %s234
      %s237 = sphi 0, %s236
      %s251 = sphi 0, %s237
      %s255 = sphi 0, %s255
      %s257 = sphi 0, %s255
      %s258 = sphi 0, %s257
      %s272 = sphi 0, %s258
      %s276 = sphi 0, %s276
      %s278 = sphi 0, %s276
      %s279 = sphi 0, %s278
      %s293 = sphi 0, %s279
      %s297 = sphi 0, %s297
      %s299 = sphi 0, %s297
      %s300 = sphi 0, %s299
      %s314 = sphi 0, %s300
      %s318 = sphi 0, %s318
      %s320 = sphi 0, %s318
      %s321 = sphi 0, %s320
      %s335 = sphi 0, %s321
      %s339 = sphi 0, %s339
      %s341 = sphi 0, %s339
      %s342 = sphi 0, %s341
      %s356 = sphi 0, %s342
      %s360 = sphi 0, %s360
      %s362 = sphi 0, %s360
      %s363 = sphi 0, %s362
      %s377 = sphi 0, %s363
      %s381 = sphi 0, %s381
      %s383 = sphi 0, %s381
      %s384 = sphi 0, %s383
      %s398 = sphi 0, %s384
      %s402 = sphi 0, %s402
      %s404 = sphi 0, %s402
      %s405 = sphi 0, %s404
      %s419 = sphi 0, %s405
      %s423 = sphi 0, %s423
      %s425 = sphi 0, %s423
      %s426 = sphi 0, %s425
      %s440 = sphi 0, %s426
      %s446 = sphi 0, %s448
      %s449 = sphi 0, %s446
      %s450 = sphi 0, %s449
      %s466 = sphi 0, %s450
    $region4: #{tpu_custom_call.1} parent=1 // loop_header_branch
      %35 = sbr.rel (%p33) target = $region8
    $region5: #{tpu_custom_call.1} parent=1 // loop_body
      %s37 = ssub.s32 %s32, 1
      %s38 = ssub.s32 %s32, 2
      %s39 = sadd.s32 %s32, 1
      %s40 = ssub.s32 %s32, %s39
      %p41 = scmp.eq.s32.totalorder %s40, 0
      %s43 = sadd.s32 %s42, 1
      %s44 = scalar_select %p41, %s42, %s43
      %p47 = pneg %p41
      %p48 = scmp.eq.s32.totalorder %s32, 1
      %p49 = por %p47, %p48
      %p50 = scmp.ne.s32.totalorder %s42, %s45
      %p51 = scmp.eq.s32.totalorder %s32, 0
      %p52 = por %p50, %p51
      %p53 = scmp.ne.s32.totalorder %s42, %s45
      %p54 = scmp.eq.s32.totalorder %s37, 1
      %p55 = por %p53, %p54
      %p56 = scmp.ne.s32.totalorder %s45, %s46
      %p57 = scmp.eq.s32.totalorder %s37, 0
      %p58 = por %p56, %p57
      %p59 = scmp.ne.s32.totalorder %s45, %s46
      %p60 = scmp.eq.s32.totalorder %s38, 1
      %p61 = por %p59, %p60
      %p63 = scmp.ne.s32.totalorder %s46, %s62
      %p64 = scmp.eq.s32.totalorder %s38, 0
      %p65 = por %p63, %p64
      %s67 = sadd.s32 %s66, 1
      %p70 = scmp.eq.s32.totalorder %s32, 1
      %p71 = scmp.ne.s32.totalorder %s66, %s68
      %p72 = scmp.eq.s32.totalorder %s32, 0
      %p73 = por %p71, %p72
      %p74 = scmp.ne.s32.totalorder %s66, %s68
      %p75 = scmp.eq.s32.totalorder %s37, 1
      %p76 = por %p74, %p75
      %p77 = scmp.ne.s32.totalorder %s68, %s69
      %p78 = scmp.eq.s32.totalorder %s37, 0
      %p79 = por %p77, %p78
      %p80 = scmp.ne.s32.totalorder %s68, %s69
      %p81 = scmp.eq.s32.totalorder %s38, 1
      %p82 = por %p80, %p81
      %p84 = scmp.ne.s32.totalorder %s69, %s83
      %p85 = scmp.eq.s32.totalorder %s38, 0
      %p86 = por %p84, %p85
      %s88 = sadd.s32 %s87, 1
      %p91 = scmp.eq.s32.totalorder %s32, 1
      %p92 = scmp.ne.s32.totalorder %s87, %s89
      %p93 = scmp.eq.s32.totalorder %s32, 0
      %p94 = por %p92, %p93
      %p95 = scmp.ne.s32.totalorder %s87, %s89
      %p96 = scmp.eq.s32.totalorder %s37, 1
      %p97 = por %p95, %p96
      %p98 = scmp.ne.s32.totalorder %s89, %s90
      %p99 = scmp.eq.s32.totalorder %s37, 0
      %p100 = por %p98, %p99
      %p101 = scmp.ne.s32.totalorder %s89, %s90
      %p102 = scmp.eq.s32.totalorder %s38, 1
      %p103 = por %p101, %p102
      %p105 = scmp.ne.s32.totalorder %s90, %s104
      %p106 = scmp.eq.s32.totalorder %s38, 0
      %p107 = por %p105, %p106
      %s109 = sadd.s32 %s108, 1
      %p112 = scmp.eq.s32.totalorder %s32, 1
      %p113 = scmp.ne.s32.totalorder %s108, %s110
      %p114 = scmp.eq.s32.totalorder %s32, 0
      %p115 = por %p113, %p114
      %p116 = scmp.ne.s32.totalorder %s108, %s110
      %p117 = scmp.eq.s32.totalorder %s37, 1
      %p118 = por %p116, %p117
      %p119 = scmp.ne.s32.totalorder %s110, %s111
      %p120 = scmp.eq.s32.totalorder %s37, 0
      %p121 = por %p119, %p120
      %p122 = scmp.ne.s32.totalorder %s110, %s111
      %p123 = scmp.eq.s32.totalorder %s38, 1
      %p124 = por %p122, %p123
      %p126 = scmp.ne.s32.totalorder %s111, %s125
      %p127 = scmp.eq.s32.totalorder %s38, 0
      %p128 = por %p126, %p127
      %s130 = sadd.s32 %s129, 1
      %p133 = scmp.eq.s32.totalorder %s32, 1
      %p134 = scmp.ne.s32.totalorder %s129, %s131
      %p135 = scmp.eq.s32.totalorder %s32, 0
      %p136 = por %p134, %p135
      %p137 = scmp.ne.s32.totalorder %s129, %s131
      %p138 = scmp.eq.s32.totalorder %s37, 1
      %p139 = por %p137, %p138
      %p140 = scmp.ne.s32.totalorder %s131, %s132
      %p141 = scmp.eq.s32.totalorder %s37, 0
      %p142 = por %p140, %p141
      %p143 = scmp.ne.s32.totalorder %s131, %s132
      %p144 = scmp.eq.s32.totalorder %s38, 1
      %p145 = por %p143, %p144
      %p147 = scmp.ne.s32.totalorder %s132, %s146
      %p148 = scmp.eq.s32.totalorder %s38, 0
      %p149 = por %p147, %p148
      %s151 = sadd.s32 %s150, 1
      %p154 = scmp.eq.s32.totalorder %s32, 1
      %p155 = scmp.ne.s32.totalorder %s150, %s152
      %p156 = scmp.eq.s32.totalorder %s32, 0
      %p157 = por %p155, %p156
      %p158 = scmp.ne.s32.totalorder %s150, %s152
      %p159 = scmp.eq.s32.totalorder %s37, 1
      %p160 = por %p158, %p159
      %p161 = scmp.ne.s32.totalorder %s152, %s153
      %p162 = scmp.eq.s32.totalorder %s37, 0
      %p163 = por %p161, %p162
      %p164 = scmp.ne.s32.totalorder %s152, %s153
      %p165 = scmp.eq.s32.totalorder %s38, 1
      %p166 = por %p164, %p165
      %p168 = scmp.ne.s32.totalorder %s153, %s167
      %p169 = scmp.eq.s32.totalorder %s38, 0
      %p170 = por %p168, %p169
      %s172 = sadd.s32 %s171, 1
      %p175 = scmp.eq.s32.totalorder %s32, 1
      %p176 = scmp.ne.s32.totalorder %s171, %s173
      %p177 = scmp.eq.s32.totalorder %s32, 0
      %p178 = por %p176, %p177
      %p179 = scmp.ne.s32.totalorder %s171, %s173
      %p180 = scmp.eq.s32.totalorder %s37, 1
      %p181 = por %p179, %p180
      %p182 = scmp.ne.s32.totalorder %s173, %s174
      %p183 = scmp.eq.s32.totalorder %s37, 0
      %p184 = por %p182, %p183
      %p185 = scmp.ne.s32.totalorder %s173, %s174
      %p186 = scmp.eq.s32.totalorder %s38, 1
      %p187 = por %p185, %p186
      %p189 = scmp.ne.s32.totalorder %s174, %s188
      %p190 = scmp.eq.s32.totalorder %s38, 0
      %p191 = por %p189, %p190
      %s193 = sadd.s32 %s192, 1
      %p196 = scmp.eq.s32.totalorder %s32, 1
      %p197 = scmp.ne.s32.totalorder %s192, %s194
      %p198 = scmp.eq.s32.totalorder %s32, 0
      %p199 = por %p197, %p198
      %p200 = scmp.ne.s32.totalorder %s192, %s194
      %p201 = scmp.eq.s32.totalorder %s37, 1
      %p202 = por %p200, %p201
      %p203 = scmp.ne.s32.totalorder %s194, %s195
      %p204 = scmp.eq.s32.totalorder %s37, 0
      %p205 = por %p203, %p204
      %p206 = scmp.ne.s32.totalorder %s194, %s195
      %p207 = scmp.eq.s32.totalorder %s38, 1
      %p208 = por %p206, %p207
      %p210 = scmp.ne.s32.totalorder %s195, %s209
      %p211 = scmp.eq.s32.totalorder %s38, 0
      %p212 = por %p210, %p211
      %s214 = sadd.s32 %s213, 1
      %p217 = scmp.eq.s32.totalorder %s32, 1
      %p218 = scmp.ne.s32.totalorder %s213, %s215
      %p219 = scmp.eq.s32.totalorder %s32, 0
      %p220 = por %p218, %p219
      %p221 = scmp.ne.s32.totalorder %s213, %s215
      %p222 = scmp.eq.s32.totalorder %s37, 1
      %p223 = por %p221, %p222
      %p224 = scmp.ne.s32.totalorder %s215, %s216
      %p225 = scmp.eq.s32.totalorder %s37, 0
      %p226 = por %p224, %p225
      %p227 = scmp.ne.s32.totalorder %s215, %s216
      %p228 = scmp.eq.s32.totalorder %s38, 1
      %p229 = por %p227, %p228
      %p231 = scmp.ne.s32.totalorder %s216, %s230
      %p232 = scmp.eq.s32.totalorder %s38, 0
      %p233 = por %p231, %p232
      %s235 = sadd.s32 %s234, 1
      %p238 = scmp.eq.s32.totalorder %s32, 1
      %p239 = scmp.ne.s32.totalorder %s234, %s236
      %p240 = scmp.eq.s32.totalorder %s32, 0
      %p241 = por %p239, %p240
      %p242 = scmp.ne.s32.totalorder %s234, %s236
      %p243 = scmp.eq.s32.totalorder %s37, 1
      %p244 = por %p242, %p243
      %p245 = scmp.ne.s32.totalorder %s236, %s237
      %p246 = scmp.eq.s32.totalorder %s37, 0
      %p247 = por %p245, %p246
      %p248 = scmp.ne.s32.totalorder %s236, %s237
      %p249 = scmp.eq.s32.totalorder %s38, 1
      %p250 = por %p248, %p249
      %p252 = scmp.ne.s32.totalorder %s237, %s251
      %p253 = scmp.eq.s32.totalorder %s38, 0
      %p254 = por %p252, %p253
      %s256 = sadd.s32 %s255, 1
      %p259 = scmp.eq.s32.totalorder %s32, 1
      %p260 = scmp.ne.s32.totalorder %s255, %s257
      %p261 = scmp.eq.s32.totalorder %s32, 0
      %p262 = por %p260, %p261
      %p263 = scmp.ne.s32.totalorder %s255, %s257
      %p264 = scmp.eq.s32.totalorder %s37, 1
      %p265 = por %p263, %p264
      %p266 = scmp.ne.s32.totalorder %s257, %s258
      %p267 = scmp.eq.s32.totalorder %s37, 0
      %p268 = por %p266, %p267
      %p269 = scmp.ne.s32.totalorder %s257, %s258
      %p270 = scmp.eq.s32.totalorder %s38, 1
      %p271 = por %p269, %p270
      %p273 = scmp.ne.s32.totalorder %s258, %s272
      %p274 = scmp.eq.s32.totalorder %s38, 0
      %p275 = por %p273, %p274
      %s277 = sadd.s32 %s276, 1
      %p280 = scmp.eq.s32.totalorder %s32, 1
      %p281 = scmp.ne.s32.totalorder %s276, %s278
      %p282 = scmp.eq.s32.totalorder %s32, 0
      %p283 = por %p281, %p282
      %p284 = scmp.ne.s32.totalorder %s276, %s278
      %p285 = scmp.eq.s32.totalorder %s37, 1
      %p286 = por %p284, %p285
      %p287 = scmp.ne.s32.totalorder %s278, %s279
      %p288 = scmp.eq.s32.totalorder %s37, 0
      %p289 = por %p287, %p288
      %p290 = scmp.ne.s32.totalorder %s278, %s279
      %p291 = scmp.eq.s32.totalorder %s38, 1
      %p292 = por %p290, %p291
      %p294 = scmp.ne.s32.totalorder %s279, %s293
      %p295 = scmp.eq.s32.totalorder %s38, 0
      %p296 = por %p294, %p295
      %s298 = sadd.s32 %s297, 1
      %p301 = scmp.eq.s32.totalorder %s32, 1
      %p302 = scmp.ne.s32.totalorder %s297, %s299
      %p303 = scmp.eq.s32.totalorder %s32, 0
      %p304 = por %p302, %p303
      %p305 = scmp.ne.s32.totalorder %s297, %s299
      %p306 = scmp.eq.s32.totalorder %s37, 1
      %p307 = por %p305, %p306
      %p308 = scmp.ne.s32.totalorder %s299, %s300
      %p309 = scmp.eq.s32.totalorder %s37, 0
      %p310 = por %p308, %p309
      %p311 = scmp.ne.s32.totalorder %s299, %s300
      %p312 = scmp.eq.s32.totalorder %s38, 1
      %p313 = por %p311, %p312
      %p315 = scmp.ne.s32.totalorder %s300, %s314
      %p316 = scmp.eq.s32.totalorder %s38, 0
      %p317 = por %p315, %p316
      %s319 = sadd.s32 %s318, 1
      %p322 = scmp.eq.s32.totalorder %s32, 1
      %p323 = scmp.ne.s32.totalorder %s318, %s320
      %p324 = scmp.eq.s32.totalorder %s32, 0
      %p325 = por %p323, %p324
      %p326 = scmp.ne.s32.totalorder %s318, %s320
      %p327 = scmp.eq.s32.totalorder %s37, 1
      %p328 = por %p326, %p327
      %p329 = scmp.ne.s32.totalorder %s320, %s321
      %p330 = scmp.eq.s32.totalorder %s37, 0
      %p331 = por %p329, %p330
      %p332 = scmp.ne.s32.totalorder %s320, %s321
      %p333 = scmp.eq.s32.totalorder %s38, 1
      %p334 = por %p332, %p333
      %p336 = scmp.ne.s32.totalorder %s321, %s335
      %p337 = scmp.eq.s32.totalorder %s38, 0
      %p338 = por %p336, %p337
      %s340 = sadd.s32 %s339, 1
      %p343 = scmp.eq.s32.totalorder %s32, 1
      %p344 = scmp.ne.s32.totalorder %s339, %s341
      %p345 = scmp.eq.s32.totalorder %s32, 0
      %p346 = por %p344, %p345
      %p347 = scmp.ne.s32.totalorder %s339, %s341
      %p348 = scmp.eq.s32.totalorder %s37, 1
      %p349 = por %p347, %p348
      %p350 = scmp.ne.s32.totalorder %s341, %s342
      %p351 = scmp.eq.s32.totalorder %s37, 0
      %p352 = por %p350, %p351
      %p353 = scmp.ne.s32.totalorder %s341, %s342
      %p354 = scmp.eq.s32.totalorder %s38, 1
      %p355 = por %p353, %p354
      %p357 = scmp.ne.s32.totalorder %s342, %s356
      %p358 = scmp.eq.s32.totalorder %s38, 0
      %p359 = por %p357, %p358
      %s361 = sadd.s32 %s360, 1
      %p364 = scmp.eq.s32.totalorder %s32, 1
      %p365 = scmp.ne.s32.totalorder %s360, %s362
      %p366 = scmp.eq.s32.totalorder %s32, 0
      %p367 = por %p365, %p366
      %p368 = scmp.ne.s32.totalorder %s360, %s362
      %p369 = scmp.eq.s32.totalorder %s37, 1
      %p370 = por %p368, %p369
      %p371 = scmp.ne.s32.totalorder %s362, %s363
      %p372 = scmp.eq.s32.totalorder %s37, 0
      %p373 = por %p371, %p372
      %p374 = scmp.ne.s32.totalorder %s362, %s363
      %p375 = scmp.eq.s32.totalorder %s38, 1
      %p376 = por %p374, %p375
      %p378 = scmp.ne.s32.totalorder %s363, %s377
      %p379 = scmp.eq.s32.totalorder %s38, 0
      %p380 = por %p378, %p379
      %s382 = sadd.s32 %s381, 1
      %p385 = scmp.eq.s32.totalorder %s32, 1
      %p386 = scmp.ne.s32.totalorder %s381, %s383
      %p387 = scmp.eq.s32.totalorder %s32, 0
      %p388 = por %p386, %p387
      %p389 = scmp.ne.s32.totalorder %s381, %s383
      %p390 = scmp.eq.s32.totalorder %s37, 1
      %p391 = por %p389, %p390
      %p392 = scmp.ne.s32.totalorder %s383, %s384
      %p393 = scmp.eq.s32.totalorder %s37, 0
      %p394 = por %p392, %p393
      %p395 = scmp.ne.s32.totalorder %s383, %s384
      %p396 = scmp.eq.s32.totalorder %s38, 1
      %p397 = por %p395, %p396
      %p399 = scmp.ne.s32.totalorder %s384, %s398
      %p400 = scmp.eq.s32.totalorder %s38, 0
      %p401 = por %p399, %p400
      %s403 = sadd.s32 %s402, 1
      %p406 = scmp.eq.s32.totalorder %s32, 1
      %p407 = scmp.ne.s32.totalorder %s402, %s404
      %p408 = scmp.eq.s32.totalorder %s32, 0
      %p409 = por %p407, %p408
      %p410 = scmp.ne.s32.totalorder %s402, %s404
      %p411 = scmp.eq.s32.totalorder %s37, 1
      %p412 = por %p410, %p411
      %p413 = scmp.ne.s32.totalorder %s404, %s405
      %p414 = scmp.eq.s32.totalorder %s37, 0
      %p415 = por %p413, %p414
      %p416 = scmp.ne.s32.totalorder %s404, %s405
      %p417 = scmp.eq.s32.totalorder %s38, 1
      %p418 = por %p416, %p417
      %p420 = scmp.ne.s32.totalorder %s405, %s419
      %p421 = scmp.eq.s32.totalorder %s38, 0
      %p422 = por %p420, %p421
      %s424 = sadd.s32 %s423, 1
      %p427 = scmp.eq.s32.totalorder %s32, 1
      %p428 = scmp.ne.s32.totalorder %s423, %s425
      %p429 = scmp.eq.s32.totalorder %s32, 0
      %p430 = por %p428, %p429
      %p431 = scmp.ne.s32.totalorder %s423, %s425
      %p432 = scmp.eq.s32.totalorder %s37, 1
      %p433 = por %p431, %p432
      %p434 = scmp.ne.s32.totalorder %s425, %s426
      %p435 = scmp.eq.s32.totalorder %s37, 0
      %p436 = por %p434, %p435
      %p437 = scmp.ne.s32.totalorder %s425, %s426
      %p438 = scmp.eq.s32.totalorder %s38, 1
      %p439 = por %p437, %p438
      %p441 = scmp.ne.s32.totalorder %s426, %s440
      %p442 = scmp.eq.s32.totalorder %s38, 0
      %p443 = por %p441, %p442
      %s444 = ssub.s32 %s32, %s39
      %p445 = scmp.eq.s32.totalorder %s444, 0
      %s447 = sadd.s32 %s446, 1
      %s448 = scalar_select %p445, %s446, %s447
      %p451 = pneg %p445
      %p452 = scmp.eq.s32.totalorder %s32, 1
      %p453 = por %p451, %p452
      %p454 = scmp.ne.s32.totalorder %s446, %s449
      %p455 = scmp.eq.s32.totalorder %s32, 0
      %p456 = por %p454, %p455
      %p457 = scmp.ne.s32.totalorder %s446, %s449
      %p458 = scmp.eq.s32.totalorder %s37, 1
      %p459 = por %p457, %p458
      %p460 = scmp.ne.s32.totalorder %s449, %s450
      %p461 = scmp.eq.s32.totalorder %s37, 0
      %p462 = por %p460, %p461
      %p463 = scmp.ne.s32.totalorder %s449, %s450
      %p464 = scmp.eq.s32.totalorder %s38, 1
      %p465 = por %p463, %p464
      %p467 = scmp.ne.s32.totalorder %s450, %s466
      %p468 = scmp.eq.s32.totalorder %s38, 0
      %p469 = por %p467, %p468
      %p470 = scmp.le.s32.totalorder 1, %s32
      %p471 = scmp.lt.s32.totalorder %s32, 3
      %p472 = pnand %p470, %p471
      %p473 = pneg %p472
      // Predicated region
      $region9: #{tpu_custom_call.1} parent=5 // pred_check
        _
      $region10: #{tpu_custom_call.1} parent=5 // pred_check_branch
        %475 = sbr.rel (%p472) target = $region12
      $region11: #{tpu_custom_call.1} parent=5 // pred_region
        %s476 = ssub.s32 %s32, 1
        // Predicated region
        $region13: #{tpu_custom_call.1} parent=11 // pred_check
          %p477 = pneg %p79
        $region14: #{tpu_custom_call.1} parent=11 // pred_check_branch
          %479 = sbr.rel (%p477) target = $region16
        $region15: #{tpu_custom_call.1} parent=11 // pred_region
          _
        $region16: #{tpu_custom_call.1} parent=11 // pred_fallthru
          _
        // Predicated region
        $region17: #{tpu_custom_call.1} parent=11 // pred_check
          %p480 = pneg %p100
        $region18: #{tpu_custom_call.1} parent=11 // pred_check_branch
          %482 = sbr.rel (%p480) target = $region20
        $region19: #{tpu_custom_call.1} parent=11 // pred_region
          _
        $region20: #{tpu_custom_call.1} parent=11 // pred_fallthru
          _
        // Predicated region
        $region21: #{tpu_custom_call.1} parent=11 // pred_check
          %p483 = pneg %p121
        $region22: #{tpu_custom_call.1} parent=11 // pred_check_branch
          %485 = sbr.rel (%p483) target = $region24
        $region23: #{tpu_custom_call.1} parent=11 // pred_region
          _
        $region24: #{tpu_custom_call.1} parent=11 // pred_fallthru
          _
        // Predicated region
        $region25: #{tpu_custom_call.1} parent=11 // pred_check
          %p486 = pneg %p142
        $region26: #{tpu_custom_call.1} parent=11 // pred_check_branch
          %488 = sbr.rel (%p486) target = $region28
        $region27: #{tpu_custom_call.1} parent=11 // pred_region
          _
        $region28: #{tpu_custom_call.1} parent=11 // pred_fallthru
          _
        // Predicated region
        $region29: #{tpu_custom_call.1} parent=11 // pred_check
          %p489 = pneg %p163
        $region30: #{tpu_custom_call.1} parent=11 // pred_check_branch
          %491 = sbr.rel (%p489) target = $region32
        $region31: #{tpu_custom_call.1} parent=11 // pred_region
          _
        $region32: #{tpu_custom_call.1} parent=11 // pred_fallthru
          _
        // Predicated region
        $region33: #{tpu_custom_call.1} parent=11 // pred_check
          %p492 = pneg %p184
        $region34: #{tpu_custom_call.1} parent=11 // pred_check_branch
          %494 = sbr.rel (%p492) target = $region36
        $region35: #{tpu_custom_call.1} parent=11 // pred_region
          _
        $region36: #{tpu_custom_call.1} parent=11 // pred_fallthru
          _
        // Predicated region
        $region37: #{tpu_custom_call.1} parent=11 // pred_check
          %p495 = pneg %p205
        $region38: #{tpu_custom_call.1} parent=11 // pred_check_branch
          %497 = sbr.rel (%p495) target = $region40
        $region39: #{tpu_custom_call.1} parent=11 // pred_region
          _
        $region40: #{tpu_custom_call.1} parent=11 // pred_fallthru
          _
        // Predicated region
        $region41: #{tpu_custom_call.1} parent=11 // pred_check
          %p498 = pneg %p226
        $region42: #{tpu_custom_call.1} parent=11 // pred_check_branch
          %500 = sbr.rel (%p498) target = $region44
        $region43: #{tpu_custom_call.1} parent=11 // pred_region
          _
        $region44: #{tpu_custom_call.1} parent=11 // pred_fallthru
          _
        // Predicated region
        $region45: #{tpu_custom_call.1} parent=11 // pred_check
          %p501 = pneg %p247
        $region46: #{tpu_custom_call.1} parent=11 // pred_check_branch
          %503 = sbr.rel (%p501) target = $region48
        $region47: #{tpu_custom_call.1} parent=11 // pred_region
          _
        $region48: #{tpu_custom_call.1} parent=11 // pred_fallthru
          _
        // Predicated region
        $region49: #{tpu_custom_call.1} parent=11 // pred_check
          %p504 = pneg %p268
        $region50: #{tpu_custom_call.1} parent=11 // pred_check_branch
          %506 = sbr.rel (%p504) target = $region52
        $region51: #{tpu_custom_call.1} parent=11 // pred_region
          _
        $region52: #{tpu_custom_call.1} parent=11 // pred_fallthru
          _
        // Predicated region
        $region53: #{tpu_custom_call.1} parent=11 // pred_check
          %p507 = pneg %p289
        $region54: #{tpu_custom_call.1} parent=11 // pred_check_branch
          %509 = sbr.rel (%p507) target = $region56
        $region55: #{tpu_custom_call.1} parent=11 // pred_region
          _
        $region56: #{tpu_custom_call.1} parent=11 // pred_fallthru
          _
        // Predicated region
        $region57: #{tpu_custom_call.1} parent=11 // pred_check
          %p510 = pneg %p310
        $region58: #{tpu_custom_call.1} parent=11 // pred_check_branch
          %512 = sbr.rel (%p510) target = $region60
        $region59: #{tpu_custom_call.1} parent=11 // pred_region
          _
        $region60: #{tpu_custom_call.1} parent=11 // pred_fallthru
          _
        // Predicated region
        $region61: #{tpu_custom_call.1} parent=11 // pred_check
          %p513 = pneg %p331
        $region62: #{tpu_custom_call.1} parent=11 // pred_check_branch
          %515 = sbr.rel (%p513) target = $region64
        $region63: #{tpu_custom_call.1} parent=11 // pred_region
          _
        $region64: #{tpu_custom_call.1} parent=11 // pred_fallthru
          _
        // Predicated region
        $region65: #{tpu_custom_call.1} parent=11 // pred_check
          %p516 = pneg %p352
        $region66: #{tpu_custom_call.1} parent=11 // pred_check_branch
          %518 = sbr.rel (%p516) target = $region68
        $region67: #{tpu_custom_call.1} parent=11 // pred_region
          _
        $region68: #{tpu_custom_call.1} parent=11 // pred_fallthru
          _
        // Predicated region
        $region69: #{tpu_custom_call.1} parent=11 // pred_check
          %p519 = pneg %p373
        $region70: #{tpu_custom_call.1} parent=11 // pred_check_branch
          %521 = sbr.rel (%p519) target = $region72
        $region71: #{tpu_custom_call.1} parent=11 // pred_region
          _
        $region72: #{tpu_custom_call.1} parent=11 // pred_fallthru
          _
        // Predicated region
        $region73: #{tpu_custom_call.1} parent=11 // pred_check
          %p522 = pneg %p394
        $region74: #{tpu_custom_call.1} parent=11 // pred_check_branch
          %524 = sbr.rel (%p522) target = $region76
        $region75: #{tpu_custom_call.1} parent=11 // pred_region
          _
        $region76: #{tpu_custom_call.1} parent=11 // pred_fallthru
          _
        // Predicated region
        $region77: #{tpu_custom_call.1} parent=11 // pred_check
          %p525 = pneg %p415
        $region78: #{tpu_custom_call.1} parent=11 // pred_check_branch
          %527 = sbr.rel (%p525) target = $region80
        $region79: #{tpu_custom_call.1} parent=11 // pred_region
          _
        $region80: #{tpu_custom_call.1} parent=11 // pred_fallthru
          _
        // Predicated region
        $region81: #{tpu_custom_call.1} parent=11 // pred_check
          %p528 = pneg %p436
        $region82: #{tpu_custom_call.1} parent=11 // pred_check_branch
          %530 = sbr.rel (%p528) target = $region84
        $region83: #{tpu_custom_call.1} parent=11 // pred_region
          _
        $region84: #{tpu_custom_call.1} parent=11 // pred_fallthru
          _
      $region12: #{tpu_custom_call.1} parent=5 // pred_fallthru
        _
      %p531 = scmp.lt.s32.totalorder %s32, 2
      // Predicated region
      $region85: #{tpu_custom_call.1} parent=5 // pred_check
        %p532 = pneg %p531
      $region86: #{tpu_custom_call.1} parent=5 // pred_check_branch
        %534 = sbr.rel (%p532) target = $region88
      $region87: #{tpu_custom_call.1} parent=5 // pred_region
        // Predicated region
        $region89: #{tpu_custom_call.1} parent=87 // pred_check
          %p535 = pneg %p52
        $region90: #{tpu_custom_call.1} parent=87 // pred_check_branch
          %537 = sbr.rel (%p535) target = $region92
        $region91: #{tpu_custom_call.1} parent=87 // pred_region
          %p538 = scmp.lt.s32.totalorder %s32, 1
          %s539 = scalar_select %p538, %s32, 1
          %s540 = smul.addr %s539, 8
          %s541 = scalar_lea.vmem %s0, %s540
        $region92: #{tpu_custom_call.1} parent=87 // pred_fallthru
          _
      $region88: #{tpu_custom_call.1} parent=5 // pred_fallthru
        _
      %p542 = scmp.le.s32.totalorder 1, %s32
      %p543 = scmp.lt.s32.totalorder %s32, 3
      %p544 = pnand %p542, %p543
      %p545 = pneg %p544
      // Predicated region
      $region93: #{tpu_custom_call.1} parent=5 // pred_check
        _
      $region94: #{tpu_custom_call.1} parent=5 // pred_check_branch
        %547 = sbr.rel (%p544) target = $region96
      $region95: #{tpu_custom_call.1} parent=5 // pred_region
        %s548 = ssub.s32 %s32, 1
        %p549 = scmp.lt.s32.totalorder %s37, 1
        %s550 = scalar_select %p549, %s37, 1
        %s551 = smul.addr %s550, 8
        %s552 = scalar_lea.vmem %s0, %s551
        %p553 = pneg %p58
        %p554 = pneg %p55
        %p555 = pneg %p79
        %p556 = pneg %p76
        %p557 = pneg %p100
        %p558 = pneg %p97
        %p559 = pneg %p121
        %p560 = pneg %p118
        %p561 = pneg %p142
        %p562 = pneg %p139
        %p563 = pneg %p163
        %p564 = pneg %p160
        %p565 = pneg %p184
        %p566 = pneg %p181
        %p567 = pneg %p205
        %p568 = pneg %p202
        %p569 = pneg %p226
        %p570 = pneg %p223
        %p571 = pneg %p247
        %p572 = pneg %p244
        %p573 = pneg %p268
        %p574 = pneg %p265
        %p575 = pneg %p289
        %p576 = pneg %p286
        %p577 = pneg %p310
        %p578 = pneg %p307
        %p579 = pneg %p331
        %p580 = pneg %p328
        %p581 = pneg %p352
        %p582 = pneg %p349
        %p583 = pneg %p373
        %p584 = pneg %p370
        %p585 = pneg %p394
        %p586 = pneg %p391
        %p587 = pneg %p415
        %p588 = pneg %p412
        %p589 = pneg %p436
        %p590 = pneg %p433
        %p591 = pneg %p462
        %p592 = pneg %p459
        %s593 = sand.u32 %s449, 1
        %s594 = scalar_lea.sflag [#allocation8], %s593
        %s595 = sand.u32 %s449, 1
        %s596 = scalar_lea.vmem [#allocation7], %s595
        %p597 = scmp.lt.s32.totalorder %s37, 1
        %s598 = scalar_select %p597, %s37, 1
        %s599 = smul.addr %s598, 8
        %s600 = scalar_lea.vmem %s0, %s599
        // Predicated region
        $region97: #{tpu_custom_call.1} parent=95 // pred_check
          _
        $region98: #{tpu_custom_call.1} parent=95 // pred_check_branch
          %603 = sbr.rel (0) target = $region100
        $region99: #{tpu_custom_call.1} parent=95 // pred_region
          loop: start=0, step=1, limit=1
          $region101: #{tpu_custom_call.1} parent=99 // loop_pre_header
            _
          $region102: #{tpu_custom_call.1} parent=99 // loop_header
            %s605 = sphi 0, %s609
            %p606 = scmp.ge.s32.totalorder %s605, 1
            %s610 = sphi %s9, %s9
            %s611 = sphi [#allocation3], [#allocation3]
          $region103: #{tpu_custom_call.1} parent=99 // loop_header_branch
            %608 = sbr.rel (%p606) target = $region107
          $region104: #{tpu_custom_call.1} parent=99 // loop_body
            %v612 = vld [vmem:[%s610] sm:$0xff]
            %613 = vst [vmem:[%s611] sm:$0xff] %v612
            %v614 = vld [vmem:[%s610 + $0x8] sm:$0xff]
            %615 = vst [vmem:[%s611 + $0x8] sm:$0xff] %v614
          $region105: #{tpu_custom_call.1} parent=99 // loop_footer
            %s609 = sadd.s32 1, %s605
          $region106: #{tpu_custom_call.1} parent=99 // loop_footer_branch
            %604 = sbr.rel target = $region102
          $region107: #{tpu_custom_call.1} parent=99 // loop_exit
            _
        $region100: #{tpu_custom_call.1} parent=95 // pred_fallthru
          _
        // Predicated region
        $region108: #{tpu_custom_call.1} parent=95 // pred_check
          _
        $region109: #{tpu_custom_call.1} parent=95 // pred_check_branch
          %617 = sbr.rel target = $region111
        $region110: #{tpu_custom_call.1} parent=95 // pred_region
          _
        $region111: #{tpu_custom_call.1} parent=95 // pred_fallthru
          _
        // Predicated region
        $region112: #{tpu_custom_call.1} parent=95 // pred_check
          _
        $region113: #{tpu_custom_call.1} parent=95 // pred_check_branch
          %620 = sbr.rel (0) target = $region115
        $region114: #{tpu_custom_call.1} parent=95 // pred_region
          %621 = vsyncadd [#allocation5], 256
        $region115: #{tpu_custom_call.1} parent=95 // pred_fallthru
          _
        %s622 = scalar_lea.sflag [#allocation5], 1
        // Predicated region
        $region116: #{tpu_custom_call.1} parent=95 // pred_check
          _
        $region117: #{tpu_custom_call.1} parent=95 // pred_check_branch
          %624 = sbr.rel (0) target = $region119
        $region118: #{tpu_custom_call.1} parent=95 // pred_region
          loop: start=0, step=1, limit=1
          $region120: #{tpu_custom_call.1} parent=118 // loop_pre_header
            _
          $region121: #{tpu_custom_call.1} parent=118 // loop_header
            %s626 = sphi 0, %s630
            %p627 = scmp.ge.s32.totalorder %s626, 1
            %s631 = sphi %s11, %s11
            %s632 = sphi [#allocation4], [#allocation4]
          $region122: #{tpu_custom_call.1} parent=118 // loop_header_branch
            %629 = sbr.rel (%p627) target = $region126
          $region123: #{tpu_custom_call.1} parent=118 // loop_body
            %v633 = vld [vmem:[%s631] sm:$0xff]
            %634 = vst [vmem:[%s632] sm:$0xff] %v633
            %v635 = vld [vmem:[%s631 + $0x8] sm:$0xff]
            %636 = vst [vmem:[%s632 + $0x8] sm:$0xff] %v635
            %v637 = vld [vmem:[%s631 + $0x10] sm:$0xff]
            %638 = vst [vmem:[%s632 + $0x10] sm:$0xff] %v637
            %v639 = vld [vmem:[%s631 + $0x18] sm:$0xff]
            %640 = vst [vmem:[%s632 + $0x18] sm:$0xff] %v639
            %v641 = vld [vmem:[%s631 + $0x20] sm:$0xff]
            %642 = vst [vmem:[%s632 + $0x20] sm:$0xff] %v641
            %v643 = vld [vmem:[%s631 + $0x28] sm:$0xff]
            %644 = vst [vmem:[%s632 + $0x28] sm:$0xff] %v643
            %v645 = vld [vmem:[%s631 + $0x30] sm:$0xff]
            %646 = vst [vmem:[%s632 + $0x30] sm:$0xff] %v645
            %v647 = vld [vmem:[%s631 + $0x38] sm:$0xff]
            %648 = vst [vmem:[%s632 + $0x38] sm:$0xff] %v647
          $region124: #{tpu_custom_call.1} parent=118 // loop_footer
            %s630 = sadd.s32 1, %s626
          $region125: #{tpu_custom_call.1} parent=118 // loop_footer_branch
            %625 = sbr.rel target = $region121
          $region126: #{tpu_custom_call.1} parent=118 // loop_exit
            _
        $region119: #{tpu_custom_call.1} parent=95 // pred_fallthru
          _
        // Predicated region
        $region127: #{tpu_custom_call.1} parent=95 // pred_check
          _
        $region128: #{tpu_custom_call.1} parent=95 // pred_check_branch
          %650 = sbr.rel target = $region130
        $region129: #{tpu_custom_call.1} parent=95 // pred_region
          _
        $region130: #{tpu_custom_call.1} parent=95 // pred_fallthru
          _
        // Predicated region
        $region131: #{tpu_custom_call.1} parent=95 // pred_check
          _
        $region132: #{tpu_custom_call.1} parent=95 // pred_check_branch
          %653 = sbr.rel (0) target = $region134
        $region133: #{tpu_custom_call.1} parent=95 // pred_region
          %654 = vsyncadd %s622, 1024
        $region134: #{tpu_custom_call.1} parent=95 // pred_fallthru
          _
        %v655 = vld [vmem:[%s600] sm:$0xff]
        %vm656 = vcmask 261120
        %v657 = vsel %vm656, %v655, 0.0
        %658 = vadd.xlane.f32.xlu0 %v657
        %v659 = vpop.xlane.xlu0 %658
        %v660 = vrcp.pop 32.0
        %v661 = vmul.f32 32.0, %v660
        %v662 = vsub.f32 1.0, %v661
        %v663 = vmul.f32 %v660, %v662
        %v664 = vadd.f32 %v660, %v663
        %vm665 = vweird.f32 %v660
        %v666 = vsel %vm665, %v660, %v664
        %v667 = vmul.f32 %v659, %v666
        %v668 = vsub.f32 %v655, %v667
        %v669 = vmul.f32 %v668, %v668
        %v670 = vsel %vm656, %v669, 0.0
        %671 = vadd.xlane.f32.xlu0 %v670
        %v672 = vpop.xlane.xlu0 %671
        %v673 = vmul.f32 %v672, %v666
        %v674 = vadd.f32 %v673, 1e-05
        %v675 = vrsqrt.pop %v674
        %v676 = vmul.f32 %v675, %v674
        %v677 = vmul.f32 %v676, %v675
        %v678 = vmul.f32 0.5, %v677
        %v679 = vsub.f32 1.5, %v678
        %v680 = vmul.f32 %v675, %v679
        %vm681 = vweird.f32 %v674
        %vm682 = vweird.f32 %v675
        %vm683 = vmor %vm681, %vm682
        %v684 = vsel %vm683, %v675, %v680
        %v685 = vmul.f32 %v668, %v684
        %v686 = vld [vmem:[%s1] sm:$0x1]
        %v688 = vperm.slane %v686, 0
        %v690 = vmul.f32 %v685, %v688
        %v691 = vld [vmem:[%s2] sm:$0x1]
        %v693 = vperm.slane %v691, 0
        %v695 = vadd.f32 %v690, %v693
        %v696 = vpack.c.bf16 %v695, %v695
        %v697 = vld [vmem:[%s3] sm:$0xf]
        %v698 = vld [vmem:[%s3 + $0x4] sm:$0xf]
        %v699 = vld [vmem:[%s3 + $0x8] sm:$0xf]
        %v700 = vld [vmem:[%s3 + $0xc] sm:$0xf]
        %v701 = vld [vmem:[%s4] sm:$0x1]
        %v703 = vperm.slane %v701, 0
        %v709 = vunpack.c.l.b16 %v697
        %v710 = vunpack.c.l.b16 %v698
        %v711 = vunpack.c.l.b16 %v699
        %v712 = vunpack.c.l.b16 %v700
        %v713 = vpack.c.b16 %v710, %v709
        %v714 = vpack.c.b16 %v712, %v711
        %v718 = vsel %vm656, %v696, 0
        %720 = vmatpush.bf16.msra.mxu0 0
        %721 = vmatpush.bf16.msra.mxu0 0
        %722 = vmatpush.bf16.msra.mxu0 0
        %723 = vmatpush.bf16.msra.mxu0 0
        %724 = vmatpush.bf16.msra.mxu0 0
        %725 = vmatpush.bf16.msra.mxu0 0
        %726 = vmatpush.bf16.msra.mxu0 %v714
        %727 = vmatpush.bf16.msra.mxu0 %v713
        %728 = vmatmul.bf16.gmra.mxu0 %v718
        %v729 = vpop.f32.mrf.mxu0
        %v730 = vadd.f32 %v703, %v729
        %v731 = vpop.f32.mrf.mxu0
        %732 = vdwg.mxu0
        %v733 = vpack.c.bf16 %v730, %v730
        %735 = vrot.lane.b32.xlu0 %v733, 96
        %v736 = vpop.permute.xlu0 %735
        %vm737 = vcmask 64512
        %v739 = vsel %vm737, %v733, 0
        %v742 = vsel %vm737, %v736, 0
        %744 = vmatpush.bf16.xpose.msra.mxu0 0
        %745 = vmatpush.bf16.xpose.msra.mxu0 0
        %746 = vmatpush.bf16.xpose.msra.mxu0 0
        %747 = vmatpush.bf16.xpose.msra.mxu0 0
        %748 = vmatpush.bf16.xpose.msra.mxu0 0
        %749 = vmatpush.bf16.xpose.msra.mxu0 0
        %750 = vmatpush.bf16.xpose.msra.mxu0 0
        %751 = vmatpush.bf16.xpose.msra.mxu0 %v742
        %752 = vmatmul.bf16.gmra.mxu0 %v739
        %v753 = vpop.f32.mrf.mxu0
        %v754 = vadd.f32 0.0, %v753
        %v755 = vpop.f32.mrf.mxu0
        %756 = vdwg.mxu0
        %v757 = vmul.f32 %v754, 0.35355338
        %v758 = vsel %vm737, %v757, -inf
        %759 = vmax.xlane.f32.xlu0 %v758
        %v760 = vpop.xlane.xlu0 %759
        %v761 = vsub.f32 %v757, %v760
        %v762 = vmul.f32 %v761, 1.442695
        %v763 = vpow.pop %v762
        %v764 = vsel %vm737, %v763, 0.0
        %765 = vadd.xlane.f32.xlu0 %v764
        %v766 = vpop.xlane.xlu0 %765
        %v767 = vrcp.pop %v766
        %v768 = vmul.f32 %v763, %v767
        %v769 = vpack.c.bf16 %v768, %v768
        %770 = vrot.lane.b32.xlu0 %v733, 64
        %v771 = vpop.permute.xlu0 %770
        %v773 = vsel %vm737, %v769, 0
        %vm775 = vcmask 1043456
        %v777 = vsel %vm775, %v771, 0
        %779 = vmatpush.bf16.msra.mxu0 0
        %780 = vmatpush.bf16.msra.mxu0 0
        %781 = vmatpush.bf16.msra.mxu0 0
        %782 = vmatpush.bf16.msra.mxu0 0
        %783 = vmatpush.bf16.msra.mxu0 0
        %784 = vmatpush.bf16.msra.mxu0 0
        %785 = vmatpush.bf16.msra.mxu0 0
        %786 = vmatpush.bf16.msra.mxu0 %v777
        %787 = vmatmul.bf16.gmra.mxu0 %v773
        %v788 = vpop.f32.mrf.mxu0
        %v789 = vadd.f32 0.0, %v788
        %v790 = vpop.f32.mrf.mxu0
        %791 = vdwg.mxu0
        %v792 = vpack.c.bf16 %v789, %v789
        %vm793 = vcmask 60416
        %794 = vst.msk [vmem:[#allocation2] sm:$0xf] %vm793, %v792
        %795 = vrot.lane.b32.xlu0 %v733, 120
        %v796 = vpop.permute.xlu0 %795
        %797 = vrot.lane.b32.xlu0 %v733, 88
        %v798 = vpop.permute.xlu0 %797
        %v800 = vsel %vm737, %v796, 0
        %v803 = vsel %vm737, %v798, 0
        %805 = vmatpush.bf16.xpose.msra.mxu0 0
        %806 = vmatpush.bf16.xpose.msra.mxu0 0
        %807 = vmatpush.bf16.xpose.msra.mxu0 0
        %808 = vmatpush.bf16.xpose.msra.mxu0 0
        %809 = vmatpush.bf16.xpose.msra.mxu0 0
        %810 = vmatpush.bf16.xpose.msra.mxu0 0
        %811 = vmatpush.bf16.xpose.msra.mxu0 0
        %812 = vmatpush.bf16.xpose.msra.mxu0 %v803
        %813 = vmatmul.bf16.gmra.mxu0 %v800
        %v814 = vpop.f32.mrf.mxu0
        %v815 = vadd.f32 0.0, %v814
        %v816 = vpop.f32.mrf.mxu0
        %817 = vdwg.mxu0
        %v818 = vmul.f32 %v815, 0.35355338
        %v819 = vsel %vm737, %v818, -inf
        %820 = vmax.xlane.f32.xlu0 %v819
        %v821 = vpop.xlane.xlu0 %820
        %v822 = vsub.f32 %v818, %v821
        %v823 = vmul.f32 %v822, 1.442695
        %v824 = vpow.pop %v823
        %v825 = vsel %vm737, %v824, 0.0
        %826 = vadd.xlane.f32.xlu0 %v825
        %v827 = vpop.xlane.xlu0 %826
        %v828 = vrcp.pop %v827
        %v829 = vmul.f32 %v824, %v828
        %v830 = vpack.c.bf16 %v829, %v829
        %831 = vrot.lane.b32.xlu0 %v733, 56
        %v832 = vpop.permute.xlu0 %831
        %v834 = vsel %vm737, %v830, 0
        %v837 = vsel %vm775, %v832, 0
        %839 = vmatpush.bf16.msra.mxu0 0
        %840 = vmatpush.bf16.msra.mxu0 0
        %841 = vmatpush.bf16.msra.mxu0 0
        %842 = vmatpush.bf16.msra.mxu0 0
        %843 = vmatpush.bf16.msra.mxu0 0
        %844 = vmatpush.bf16.msra.mxu0 0
        %845 = vmatpush.bf16.msra.mxu0 0
        %846 = vmatpush.bf16.msra.mxu0 %v837
        %847 = vmatmul.bf16.gmra.mxu0 %v834
        %v848 = vpop.f32.mrf.mxu0
        %v849 = vadd.f32 0.0, %v848
        %v850 = vpop.f32.mrf.mxu0
        %851 = vdwg.mxu0
        %v852 = vpack.c.bf16 %v849, %v849
        %854 = vrot.lane.b32.xlu0 %v852, 8
        %v855 = vpop.permute.xlu0 %854
        %vm857 = vcmask 126016
        %858 = vst.msk [vmem:[#allocation2] sm:$0xf] %vm857, %v855
        %859 = vrot.lane.b32.xlu0 %v733, 112
        %v860 = vpop.permute.xlu0 %859
        %861 = vrot.lane.b32.xlu0 %v733, 80
        %v862 = vpop.permute.xlu0 %861
        %v864 = vsel %vm737, %v860, 0
        %v867 = vsel %vm737, %v862, 0
        %869 = vmatpush.bf16.xpose.msra.mxu0 0
        %870 = vmatpush.bf16.xpose.msra.mxu0 0
        %871 = vmatpush.bf16.xpose.msra.mxu0 0
        %872 = vmatpush.bf16.xpose.msra.mxu0 0
        %873 = vmatpush.bf16.xpose.msra.mxu0 0
        %874 = vmatpush.bf16.xpose.msra.mxu0 0
        %875 = vmatpush.bf16.xpose.msra.mxu0 0
        %876 = vmatpush.bf16.xpose.msra.mxu0 %v867
        %877 = vmatmul.bf16.gmra.mxu0 %v864
        %v878 = vpop.f32.mrf.mxu0
        %v879 = vadd.f32 0.0, %v878
        %v880 = vpop.f32.mrf.mxu0
        %881 = vdwg.mxu0
        %v882 = vmul.f32 %v879, 0.35355338
        %v883 = vsel %vm737, %v882, -inf
        %884 = vmax.xlane.f32.xlu0 %v883
        %v885 = vpop.xlane.xlu0 %884
        %v886 = vsub.f32 %v882, %v885
        %v887 = vmul.f32 %v886, 1.442695
        %v888 = vpow.pop %v887
        %v889 = vsel %vm737, %v888, 0.0
        %890 = vadd.xlane.f32.xlu0 %v889
        %v891 = vpop.xlane.xlu0 %890
        %v892 = vrcp.pop %v891
        %v893 = vmul.f32 %v888, %v892
        %v894 = vpack.c.bf16 %v893, %v893
        %895 = vrot.lane.b32.xlu0 %v733, 48
        %v896 = vpop.permute.xlu0 %895
        %v898 = vsel %vm737, %v894, 0
        %v901 = vsel %vm775, %v896, 0
        %903 = vmatpush.bf16.msra.mxu0 0
        %904 = vmatpush.bf16.msra.mxu0 0
        %905 = vmatpush.bf16.msra.mxu0 0
        %906 = vmatpush.bf16.msra.mxu0 0
        %907 = vmatpush.bf16.msra.mxu0 0
        %908 = vmatpush.bf16.msra.mxu0 0
        %909 = vmatpush.bf16.msra.mxu0 0
        %910 = vmatpush.bf16.msra.mxu0 %v901
        %911 = vmatmul.bf16.gmra.mxu0 %v898
        %v912 = vpop.f32.mrf.mxu0
        %v913 = vadd.f32 0.0, %v912
        %v914 = vpop.f32.mrf.mxu0
        %915 = vdwg.mxu0
        %v916 = vpack.c.bf16 %v913, %v913
        %918 = vrot.lane.b32.xlu0 %v916, 16
        %v919 = vpop.permute.xlu0 %918
        %vm921 = vcmask 191616
        %922 = vst.msk [vmem:[#allocation2] sm:$0xf] %vm921, %v919
        %923 = vrot.lane.b32.xlu0 %v733, 104
        %v924 = vpop.permute.xlu0 %923
        %925 = vrot.lane.b32.xlu0 %v733, 72
        %v926 = vpop.permute.xlu0 %925
        %v928 = vsel %vm737, %v924, 0
        %v931 = vsel %vm737, %v926, 0
        %933 = vmatpush.bf16.xpose.msra.mxu0 0
        %934 = vmatpush.bf16.xpose.msra.mxu0 0
        %935 = vmatpush.bf16.xpose.msra.mxu0 0
        %936 = vmatpush.bf16.xpose.msra.mxu0 0
        %937 = vmatpush.bf16.xpose.msra.mxu0 0
        %938 = vmatpush.bf16.xpose.msra.mxu0 0
        %939 = vmatpush.bf16.xpose.msra.mxu0 0
        %940 = vmatpush.bf16.xpose.msra.mxu0 %v931
        %941 = vmatmul.bf16.gmra.mxu0 %v928
        %v942 = vpop.f32.mrf.mxu0
        %v943 = vadd.f32 0.0, %v942
        %v944 = vpop.f32.mrf.mxu0
        %945 = vdwg.mxu0
        %v946 = vmul.f32 %v943, 0.35355338
        %v947 = vsel %vm737, %v946, -inf
        %948 = vmax.xlane.f32.xlu0 %v947
        %v949 = vpop.xlane.xlu0 %948
        %v950 = vsub.f32 %v946, %v949
        %v951 = vmul.f32 %v950, 1.442695
        %v952 = vpow.pop %v951
        %v953 = vsel %vm737, %v952, 0.0
        %954 = vadd.xlane.f32.xlu0 %v953
        %v955 = vpop.xlane.xlu0 %954
        %v956 = vrcp.pop %v955
        %v957 = vmul.f32 %v952, %v956
        %v958 = vpack.c.bf16 %v957, %v957
        %959 = vrot.lane.b32.xlu0 %v733, 40
        %v960 = vpop.permute.xlu0 %959
        %v962 = vsel %vm737, %v958, 0
        %v965 = vsel %vm775, %v960, 0
        %967 = vmatpush.bf16.msra.mxu0 0
        %968 = vmatpush.bf16.msra.mxu0 0
        %969 = vmatpush.bf16.msra.mxu0 0
        %970 = vmatpush.bf16.msra.mxu0 0
        %971 = vmatpush.bf16.msra.mxu0 0
        %972 = vmatpush.bf16.msra.mxu0 0
        %973 = vmatpush.bf16.msra.mxu0 0
        %974 = vmatpush.bf16.msra.mxu0 %v965
        %975 = vmatmul.bf16.gmra.mxu0 %v962
        %v976 = vpop.f32.mrf.mxu0
        %v977 = vadd.f32 0.0, %v976
        %v978 = vpop.f32.mrf.mxu0
        %979 = vdwg.mxu0
        %v980 = vpack.c.bf16 %v977, %v977
        %982 = vrot.lane.b32.xlu0 %v980, 24
        %v983 = vpop.permute.xlu0 %982
        %vm985 = vcmask 257216
        %986 = vst.msk [vmem:[#allocation2] sm:$0xf] %vm985, %v983
        %v987 = vld [vmem:[#allocation2] sm:$0xf]
        %v988 = vld [vmem:[%s5] sm:$0xf]
        %v989 = vld [vmem:[%s5 + $0x4] sm:$0xf]
        %v990 = vld [vmem:[%s5 + $0x8] sm:$0xf]
        %v991 = vld [vmem:[%s5 + $0xc] sm:$0xf]
        %v992 = vld [vmem:[%s6] sm:$0x1]
        %v994 = vperm.slane %v992, 0
        %v1000 = vunpack.c.l.b16 %v988
        %v1001 = vunpack.c.l.b16 %v989
        %v1002 = vunpack.c.l.b16 %v990
        %v1003 = vunpack.c.l.b16 %v991
        %v1004 = vpack.c.b16 %v1001, %v1000
        %v1005 = vpack.c.b16 %v1003, %v1002
        %v1009 = vsel %vm656, %v987, 0
        %1011 = vmatpush.bf16.msra.mxu0 0
        %1012 = vmatpush.bf16.msra.mxu0 0
        %1013 = vmatpush.bf16.msra.mxu0 0
        %1014 = vmatpush.bf16.msra.mxu0 0
        %1015 = vmatpush.bf16.msra.mxu0 0
        %1016 = vmatpush.bf16.msra.mxu0 0
        %1017 = vmatpush.bf16.msra.mxu0 %v1005
        %1018 = vmatpush.bf16.msra.mxu0 %v1004
        %1019 = vmatmul.bf16.gmra.mxu0 %v1009
        %v1020 = vpop.f32.mrf.mxu0
        %v1021 = vadd.f32 %v994, %v1020
        %v1022 = vpop.f32.mrf.mxu0
        %1023 = vdwg.mxu0
        %v1024 = vadd.f32 %v1021, %v655
        %v1025 = vsel %vm656, %v1024, 0.0
        %1026 = vadd.xlane.f32.xlu0 %v1025
        %v1027 = vpop.xlane.xlu0 %1026
        %v1028 = vmul.f32 %v1027, %v666
        %v1029 = vsub.f32 %v1024, %v1028
        %v1030 = vmul.f32 %v1029, %v1029
        %v1031 = vsel %vm656, %v1030, 0.0
        %1032 = vadd.xlane.f32.xlu0 %v1031
        %v1033 = vpop.xlane.xlu0 %1032
        %v1034 = vmul.f32 %v1033, %v666
        %v1035 = vadd.f32 %v1034, 1e-05
        %v1036 = vrsqrt.pop %v1035
        %v1037 = vmul.f32 %v1036, %v1035
        %v1038 = vmul.f32 %v1037, %v1036
        %v1039 = vmul.f32 0.5, %v1038
        %v1040 = vsub.f32 1.5, %v1039
        %v1041 = vmul.f32 %v1036, %v1040
        %vm1042 = vweird.f32 %v1035
        %vm1043 = vweird.f32 %v1036
        %vm1044 = vmor %vm1042, %vm1043
        %v1045 = vsel %vm1044, %v1036, %v1041
        %v1046 = vmul.f32 %v1029, %v1045
        %v1047 = vld [vmem:[%s7] sm:$0x1]
        %v1049 = vperm.slane %v1047, 0
        %v1051 = vmul.f32 %v1046, %v1049
        %v1052 = vld [vmem:[%s8] sm:$0x1]
        %v1054 = vperm.slane %v1052, 0
        %v1056 = vadd.f32 %v1051, %v1054
        %s1057 = smul.u32 4, 4
        %s1058 = smul.u32 %s1057, 1
        %s1059 = sshll.u32 %s1058, 4
        %1060 = dma.done [#allocation5], %s1059
        %v1061 = vpack.c.bf16 %v1056, %v1056
        %v1062 = vld [vmem:[#allocation3] sm:$0xf]
        %v1063 = vld [vmem:[#allocation3 + $0x4] sm:$0xf]
        %v1064 = vld [vmem:[#allocation3 + $0x8] sm:$0xf]
        %v1065 = vld [vmem:[#allocation3 + $0xc] sm:$0xf]
        %v1066 = vld [vmem:[%s10] sm:$0x1]
        %v1068 = vperm.slane %v1066, 0
        %v1074 = vunpack.c.l.b16 %v1062
        %v1075 = vunpack.c.l.b16 %v1063
        %v1076 = vunpack.c.l.b16 %v1064
        %v1077 = vunpack.c.l.b16 %v1065
        %v1078 = vpack.c.b16 %v1075, %v1074
        %v1079 = vpack.c.b16 %v1077, %v1076
        %v1083 = vsel %vm656, %v1061, 0
        %1085 = vmatpush.bf16.msra.mxu0 0
        %1086 = vmatpush.bf16.msra.mxu0 0
        %1087 = vmatpush.bf16.msra.mxu0 0
        %1088 = vmatpush.bf16.msra.mxu0 0
        %1089 = vmatpush.bf16.msra.mxu0 0
        %1090 = vmatpush.bf16.msra.mxu0 0
        %1091 = vmatpush.bf16.msra.mxu0 %v1079
        %1092 = vmatpush.bf16.msra.mxu0 %v1078
        %1093 = vmatmul.bf16.gmra.mxu0 %v1083
        %v1094 = vpop.f32.mrf.mxu0
        %v1095 = vadd.f32 %v1068, %v1094
        %v1096 = vpop.f32.mrf.mxu0
        %1097 = vdwg.mxu0
        %v1098 = vmul.f32 %v1095, 1.702
        %v1099 = vxor.u32 %v1098, 2147483648
        %v1100 = vmul.f32 %v1099, 1.442695
        %v1101 = vpow.pop %v1100
        %v1102 = vadd.f32 %v1101, 1.0
        %v1103 = vrcp.pop %v1102
        %v1104 = vmul.f32 %v1102, %v1103
        %v1105 = vsub.f32 1.0, %v1104
        %v1106 = vmul.f32 %v1103, %v1105
        %v1107 = vadd.f32 %v1103, %v1106
        %vm1108 = vweird.f32 %v1102
        %vm1109 = vweird.f32 %v1103
        %vm1110 = vmor %vm1108, %vm1109
        %v1111 = vsel %vm1110, %v1103, %v1107
        %v1112 = vand.u32 2147483647, %v1102
        %vm1113 = vcmp.eq.f32.partialorder %v1112, 8.507059e+37
        %v1114 = vand.u32 %v1102, 2147483648
        %v1115 = vor.u32 1.1754944e-38, %v1114
        %v1116 = vsel %vm1113, %v1115, %v1111
        %v1117 = vmul.f32 1.0, %v1116
        %v1118 = vmul.f32 %v1095, %v1117
        %s1119 = smul.u32 4, 16
        %s1120 = smul.u32 %s1119, 1
        %s1121 = sshll.u32 %s1120, 4
        %1122 = dma.done %s622, %s1121
        %v1123 = vpack.c.bf16 %v1118, %v1118
        %v1124 = vld [vmem:[#allocation4] sm:$0xf]
        %v1125 = vld [vmem:[#allocation4 + $0x4] sm:$0xf]
        %v1126 = vld [vmem:[#allocation4 + $0x8] sm:$0xf]
        %v1127 = vld [vmem:[#allocation4 + $0xc] sm:$0xf]
        %v1128 = vld [vmem:[#allocation4 + $0x10] sm:$0xf]
        %v1129 = vld [vmem:[#allocation4 + $0x14] sm:$0xf]
        %v1130 = vld [vmem:[#allocation4 + $0x18] sm:$0xf]
        %v1131 = vld [vmem:[#allocation4 + $0x1c] sm:$0xf]
        %v1132 = vld [vmem:[#allocation4 + $0x20] sm:$0xf]
        %v1133 = vld [vmem:[#allocation4 + $0x24] sm:$0xf]
        %v1134 = vld [vmem:[#allocation4 + $0x28] sm:$0xf]
        %v1135 = vld [vmem:[#allocation4 + $0x2c] sm:$0xf]
        %v1136 = vld [vmem:[#allocation4 + $0x30] sm:$0xf]
        %v1137 = vld [vmem:[#allocation4 + $0x34] sm:$0xf]
        %v1138 = vld [vmem:[#allocation4 + $0x38] sm:$0xf]
        %v1139 = vld [vmem:[#allocation4 + $0x3c] sm:$0xf]
        %v1140 = vld [vmem:[%s12] sm:$0x1]
        %v1142 = vperm.slane %v1140, 0
        %v1160 = vunpack.c.l.b16 %v1124
        %v1161 = vunpack.c.l.b16 %v1125
        %v1162 = vunpack.c.l.b16 %v1126
        %v1163 = vunpack.c.l.b16 %v1127
        %v1164 = vunpack.c.l.b16 %v1128
        %v1165 = vunpack.c.l.b16 %v1129
        %v1166 = vunpack.c.l.b16 %v1130
        %v1167 = vunpack.c.l.b16 %v1131
        %v1168 = vunpack.c.l.b16 %v1132
        %v1169 = vunpack.c.l.b16 %v1133
        %v1170 = vunpack.c.l.b16 %v1134
        %v1171 = vunpack.c.l.b16 %v1135
        %v1172 = vunpack.c.l.b16 %v1136
        %v1173 = vunpack.c.l.b16 %v1137
        %v1174 = vunpack.c.l.b16 %v1138
        %v1175 = vunpack.c.l.b16 %v1139
        %v1176 = vpack.c.b16 %v1161, %v1160
        %v1177 = vpack.c.b16 %v1163, %v1162
        %v1178 = vpack.c.b16 %v1165, %v1164
        %v1179 = vpack.c.b16 %v1167, %v1166
        %v1180 = vpack.c.b16 %v1169, %v1168
        %v1181 = vpack.c.b16 %v1171, %v1170
        %v1182 = vpack.c.b16 %v1173, %v1172
        %v1183 = vpack.c.b16 %v1175, %v1174
        %1192 = vmatpush.bf16.msra.mxu0 %v1183
        %1193 = vmatpush.bf16.msra.mxu0 %v1182
        %1194 = vmatpush.bf16.msra.mxu0 %v1181
        %1195 = vmatpush.bf16.msra.mxu0 %v1180
        %1196 = vmatpush.bf16.msra.mxu0 %v1179
        %1197 = vmatpush.bf16.msra.mxu0 %v1178
        %1198 = vmatpush.bf16.msra.mxu0 %v1177
        %1199 = vmatpush.bf16.msra.mxu0 %v1176
        %1200 = vmatmul.bf16.gmra.mxu0 %v1123
        %v1201 = vpop.f32.mrf.mxu0
        %v1202 = vadd.f32 %v1142, %v1201
        %v1203 = vpop.f32.mrf.mxu0
        %1204 = vdwg.mxu0
        %v1205 = vadd.f32 %v1202, %v1024
        %v1206 = vld [vmem:[%s13] sm:$0xff]
        %1208 = vset.pattern.permute.xlu0 0
        %1209 = vperm.xlu0 %1208, %v1206
        %v1210 = vpop.permute.xlu0 %1209
        %v1212 = vmul.f32 %v1205, %v1210
        %v1213 = vsel %vm656, %v1212, 0.0
        %v1214 = vrot.slane %v1213, 4
        %v1215 = vadd.f32 %v1213, %v1214
        %v1216 = vrot.slane %v1215, 2
        %v1217 = vadd.f32 %v1215, %v1216
        %v1218 = vrot.slane %v1217, 1
        %v1219 = vadd.f32 %v1217, %v1218
        %v1220 = vld [vmem:[#allocation6] sm:$0x1]
        %1222 = vset.pattern.permute.xlu0 0
        %1223 = vperm.xlu0 %1222, %v1220
        %v1224 = vpop.permute.xlu0 %1223
        %v1226 = vperm.slane %v1224, 0
        %v1227 = vadd.f32 %v1219, %v1226
        %v1228 = vld [vmem:[%s15] sm:$0xff]
        %v1229 = vld [vmem:[%s15 + $0x8] sm:$0xff]
        %v1230 = vld [vmem:[%s15 + $0x10] sm:$0xff]
        %v1231 = vld [vmem:[%s15 + $0x18] sm:$0xff]
        %v1232 = vld [vmem:[%s16] sm:$0x1]
        %v1234 = vsel %vm656, %v1227, 0
        %1236 = vmatpush.msra.mxu0 0.0
        %1237 = vmatpush.msra.mxu0 0.0
        %1238 = vmatpush.msra.mxu0 0.0
        %1239 = vmatpush.msra.mxu0 0.0
        %1240 = vmatpush.msra.mxu0 0.0
        %1241 = vmatpush.msra.mxu0 0.0
        %1242 = vmatpush.msra.mxu0 0.0
        %1243 = vmatpush.msra.mxu0 0.0
        %1244 = vmatpush.msra.mxu0 0.0
        %1245 = vmatpush.msra.mxu0 0.0
        %1246 = vmatpush.msra.mxu0 0.0
        %1247 = vmatpush.msra.mxu0 0.0
        %1248 = vmatpush.msra.mxu0 %v1231
        %1249 = vmatpush.msra.mxu0 %v1230
        %1250 = vmatpush.msra.mxu0 %v1229
        %1251 = vmatpush.msra.mxu0 %v1228
        %1252 = vmatmul.f32.gmra.mxu0 %v1234
        %v1253 = vpop.f32.mrf.mxu0
        %v1254 = vadd.f32 %v1232, %v1253
        %1255 = vdwg.mxu0
        %v1256 = vmul.f32 %v1254, 1.702
        %v1257 = vxor.u32 %v1256, 2147483648
        %v1258 = vmul.f32 %v1257, 1.442695
        %v1259 = vpow.pop %v1258
        %v1260 = vadd.f32 %v1259, 1.0
        %v1261 = vrcp.pop %v1260
        %v1262 = vmul.f32 %v1260, %v1261
        %v1263 = vsub.f32 1.0, %v1262
        %v1264 = vmul.f32 %v1261, %v1263
        %v1265 = vadd.f32 %v1261, %v1264
        %vm1266 = vweird.f32 %v1260
        %vm1267 = vweird.f32 %v1261
        %vm1268 = vmor %vm1266, %vm1267
        %v1269 = vsel %vm1268, %v1261, %v1265
        %v1270 = vand.u32 2147483647, %v1260
        %vm1271 = vcmp.eq.f32.partialorder %v1270, 8.507059e+37
        %v1272 = vand.u32 %v1260, 2147483648
        %v1273 = vor.u32 1.1754944e-38, %v1272
        %v1274 = vsel %vm1271, %v1273, %v1269
        %v1275 = vmul.f32 1.0, %v1274
        %v1276 = vmul.f32 %v1254, %v1275
        %v1277 = vld [vmem:[%s17] sm:$0xff]
        %v1278 = vld [vmem:[%s17 + $0x8] sm:$0xff]
        %v1279 = vld [vmem:[%s18] sm:$0x1]
        %vm1280 = vcmask 130048
        %v1282 = vsel %vm1280, %v1276, 0
        %1284 = vmatpush.msra.mxu0 0.0
        %1285 = vmatpush.msra.mxu0 0.0
        %1286 = vmatpush.msra.mxu0 0.0
        %1287 = vmatpush.msra.mxu0 0.0
        %1288 = vmatpush.msra.mxu0 0.0
        %1289 = vmatpush.msra.mxu0 0.0
        %1290 = vmatpush.msra.mxu0 0.0
        %1291 = vmatpush.msra.mxu0 0.0
        %1292 = vmatpush.msra.mxu0 0.0
        %1293 = vmatpush.msra.mxu0 0.0
        %1294 = vmatpush.msra.mxu0 0.0
        %1295 = vmatpush.msra.mxu0 0.0
        %1296 = vmatpush.msra.mxu0 0.0
        %1297 = vmatpush.msra.mxu0 0.0
        %1298 = vmatpush.msra.mxu0 %v1278
        %1299 = vmatpush.msra.mxu0 %v1277
        %1300 = vmatmul.f32.gmra.mxu0 %v1282
        %v1301 = vpop.f32.mrf.mxu0
        %v1302 = vadd.f32 %v1279, %v1301
        %1303 = vdwg.mxu0
        %v1304 = vadd.f32 %v1302, %v1254
        %vm1305 = vcmask 122880
        %v1306 = vsel %vm1305, %v1304, 0.0
        %1307 = vadd.xlane.f32.xlu0 %v1306
        %v1308 = vpop.xlane.xlu0 %1307
        %v1309 = vrcp.pop 16.0
        %v1310 = vmul.f32 16.0, %v1309
        %v1311 = vsub.f32 1.0, %v1310
        %v1312 = vmul.f32 %v1309, %v1311
        %v1313 = vadd.f32 %v1309, %v1312
        %vm1314 = vweird.f32 %v1309
        %v1315 = vsel %vm1314, %v1309, %v1313
        %v1316 = vmul.f32 %v1308, %v1315
        %v1317 = vsub.f32 %v1304, %v1316
        %v1318 = vmul.f32 %v1317, %v1317
        %v1319 = vsel %vm1305, %v1318, 0.0
        %1320 = vadd.xlane.f32.xlu0 %v1319
        %v1321 = vpop.xlane.xlu0 %1320
        %v1322 = vmul.f32 %v1321, %v1315
        %v1323 = vadd.f32 %v1322, 1e-05
        %v1324 = vrsqrt.pop %v1323
        %v1325 = vmul.f32 %v1324, %v1323
        %v1326 = vmul.f32 %v1325, %v1324
        %v1327 = vmul.f32 0.5, %v1326
        %v1328 = vsub.f32 1.5, %v1327
        %v1329 = vmul.f32 %v1324, %v1328
        %vm1330 = vweird.f32 %v1323
        %vm1331 = vweird.f32 %v1324
        %vm1332 = vmor %vm1330, %vm1331
        %v1333 = vsel %vm1332, %v1324, %v1329
        %v1334 = vmul.f32 %v1317, %v1333
        %v1335 = vld [vmem:[%s19] sm:$0x1]
        %v1336 = vmul.f32 %v1334, %v1335
        %v1337 = vld [vmem:[%s20] sm:$0x1]
        %v1338 = vadd.f32 %v1336, %v1337
        %1339 = vst.msk [vmem:[%s596] sm:$0x1] %vm1305, %v1338
        %s1340 = sand.u32 %s449, 1
        %s1341 = scalar_lea.sflag [#allocation8], %s1340
        %s1342 = sand.u32 %s449, 1
        %s1343 = scalar_lea.vmem [#allocation7], %s1342
        // Predicated region
        $region135: #{tpu_custom_call.1} parent=95 // pred_check
          %p1344 = pneg %p459
        $region136: #{tpu_custom_call.1} parent=95 // pred_check_branch
          %1346 = sbr.rel (%p1344) target = $region138
        $region137: #{tpu_custom_call.1} parent=95 // pred_region
          %1348 = vsyncadd %s1341, 0
          %s1349 = scalar_lea.hbm %s21, %s37
          %s1351 = sshll.u32 %s1343, 4
          %s1352 = int_to_ptr.vmem [resolvable:$true] %s1351
          %s1353 = sshll.u32 %s1349, 4
          %s1354 = int_to_ptr.hbm [resolvable:$true] %s1353
          %1356 = dma.vmem_to_hbm [thread:$0]  %s1352, 16, %s1354, %s1341
        $region138: #{tpu_custom_call.1} parent=95 // pred_fallthru
          _
      $region96: #{tpu_custom_call.1} parent=5 // pred_fallthru
        _
      %p1357 = scmp.le.s32.totalorder 2, %s32
      // Predicated region
      $region139: #{tpu_custom_call.1} parent=5 // pred_check
        %p1358 = pneg %p1357
      $region140: #{tpu_custom_call.1} parent=5 // pred_check_branch
        %1360 = sbr.rel (%p1358) target = $region142
      $region141: #{tpu_custom_call.1} parent=5 // pred_region
        %s1361 = ssub.s32 %s32, 2
        // Predicated region
        $region143: #{tpu_custom_call.1} parent=141 // pred_check
          %p1362 = pneg %p465
        $region144: #{tpu_custom_call.1} parent=141 // pred_check_branch
          %1364 = sbr.rel (%p1362) target = $region146
        $region145: #{tpu_custom_call.1} parent=141 // pred_region
          %s1365 = sand.u32 %s450, 1
          %s1366 = scalar_lea.sflag [#allocation8], %s1365
          %s1367 = sand.u32 %s450, 1
          %s1368 = scalar_lea.vmem [#allocation7], %s1367
          %1370 = dma.done %s1366, 16
        $region146: #{tpu_custom_call.1} parent=141 // pred_fallthru
          _
      $region142: #{tpu_custom_call.1} parent=5 // pred_fallthru
        _
    $region6: #{tpu_custom_call.1} parent=1 // loop_footer
      %s36 = sadd.s32 1, %s32
    $region7: #{tpu_custom_call.1} parent=1 // loop_footer_branch
      %31 = sbr.rel target = $region3
    $region8: #{tpu_custom_call.1} parent=1 // loop_exit
      _
    %1371 = vsyncpa [#allocation8], 1
    %s1372 = scalar_lea.sflag [#allocation8], 1
    %1373 = vsyncpa %s1372, 1
  %1374 = vsyncmov [#allocation5]
  %s1375 = vpop.sfrf %1374
  %p1376 = scmp.eq.s32.totalorder %s1375, 0
  %p1377 = pneg %p1376
  %1379 = shalt.err (%p1377)
  %s1380 = scalar_lea.sflag [#allocation5], 1
  %1381 = vsyncmov %s1380
  %s1382 = vpop.sfrf %1381
  %p1383 = scmp.eq.s32.totalorder %s1382, 0
  %p1384 = pneg %p1383
  %1386 = shalt.err (%p1384)

</llo_original>
